<compile_context>
chip_gen: v7x
topology: tpu7x:2x2x1
jax: 0.10.0
libtpu: 0.0.40
codegen_flags: <defaults>
</compile_context>

<pallas_src>
import functools

import jax
import jax.numpy as jnp
from jax.experimental import pallas as pl
from jax.experimental.pallas import tpu as pltpu


def conv_bn_relu_kernel(x_ref, w_ref, gamma_ref, beta_ref, o_ref, *, eps, m_true):
    # Single K = KW*Cin contraction on the MXU (bf16 in, f32 accumulate).
    acc = jnp.dot(x_ref[...], w_ref[...],
                  preferred_element_type=jnp.float32)          # (M_pad, Cout) f32

    # BatchNorm2d training-mode batch statistics over the true M rows.
    # Pad rows are all-zero -> contribute nothing to either sum.
    inv_m = 1.0 / m_true
    s1 = jnp.sum(acc, axis=0, keepdims=True)                   # (1, Cout)
    s2 = jnp.sum(acc * acc, axis=0, keepdims=True)             # (1, Cout)
    mean = s1 * inv_m
    var = s2 * inv_m - mean * mean                             # biased variance
    inv_std = jax.lax.rsqrt(var + eps)                         # EUP

    # Fold BN into one scale/bias pair per channel, then ReLU.
    scale = gamma_ref[...] * inv_std                           # (1, Cout)
    bias = beta_ref[...] - mean * scale                        # (1, Cout)
    o_ref[...] = jnp.maximum(acc * scale + bias, 0.0)


def _round_up(x, m):
    return (x + m - 1) // m * m


@functools.partial(jax.jit, static_argnames=("eps",))
def conv_bn_relu(x_nchw, w_oihw, gamma, beta, eps=1e-3):
    N, Cin, H, W = x_nchw.shape
    Cout, Cin_w, KH, KW = w_oihw.shape
    assert Cin_w == Cin and KH == 1 and KW == 3

    M = N * H * W
    M_pad = _round_up(M, 32)          # clean sublane tiling for bf16/f32
    K = KW * Cin

    # ---- glue (fused by jit): NCHW -> padded im2col (M_pad, K), bf16 ----
    x_nhwc = jnp.transpose(x_nchw, (0, 2, 3, 1)).astype(jnp.bfloat16)  # (N,H,W,Cin)
    x_p = jnp.pad(x_nhwc, ((0, 0), (0, 0), (1, 1), (0, 0)))            # pad W by 1|1
    taps = [x_p[:, :, k:k + W, :] for k in range(KW)]                  # 3 x (N,H,W,Cin)
    x_cat = jnp.concatenate(taps, axis=-1).reshape(M, K)               # (M, K)
    x_cat = jnp.pad(x_cat, ((0, M_pad - M), (0, 0)))                   # (M_pad, K)

    # Weight (Cout, Cin, 1, KW) -> (K = KW*Cin, Cout), bf16.
    w_cat = jnp.transpose(w_oihw[:, :, 0, :], (2, 1, 0)).reshape(K, Cout)
    w_cat = w_cat.astype(jnp.bfloat16)

    gamma2d = gamma.reshape(1, Cout).astype(jnp.float32)
    beta2d = beta.reshape(1, Cout).astype(jnp.float32)

    cost = pl.CostEstimate(
        flops=2 * M_pad * K * Cout + 8 * M_pad * Cout,
        transcendentals=Cout,
        bytes_accessed=(x_cat.size * 2 + w_cat.size * 2
                        + (gamma2d.size + beta2d.size) * 4
                        + M_pad * Cout * 4),
    )

    out_pad = pl.pallas_call(
        functools.partial(conv_bn_relu_kernel, eps=eps, m_true=M),
        out_shape=jax.ShapeDtypeStruct((M_pad, Cout), jnp.float32),
        in_specs=[
            pl.BlockSpec(memory_space=pltpu.MemorySpace.VMEM),
            pl.BlockSpec(memory_space=pltpu.MemorySpace.VMEM),
            pl.BlockSpec(memory_space=pltpu.MemorySpace.VMEM),
            pl.BlockSpec(memory_space=pltpu.MemorySpace.VMEM),
        ],
        out_specs=pl.BlockSpec(memory_space=pltpu.MemorySpace.VMEM),
        cost_estimate=cost,
    )(x_cat, w_cat, gamma2d, beta2d)

    # ---- glue: back to NCHW ----
    out_nhwc = out_pad[:M].reshape(N, H, W, Cout)
    return jnp.transpose(out_nhwc, (0, 3, 1, 2))                       # (N,Cout,H,W)


def reference(x_nchw, w_oihw, gamma, beta, eps=1e-3):
    conv = jax.lax.conv_general_dilated(
        x_nchw, w_oihw, window_strides=(1, 1), padding=((0, 0), (1, 1)),
        dimension_numbers=("NCHW", "OIHW", "NCHW"),
        precision=jax.lax.Precision.HIGHEST)
    mean = conv.mean(axis=(0, 2, 3), keepdims=True)
    var = ((conv - mean) ** 2).mean(axis=(0, 2, 3), keepdims=True)
    y = (conv - mean) * jax.lax.rsqrt(var + eps)
    y = y * gamma.reshape(1, -1, 1, 1) + beta.reshape(1, -1, 1, 1)
    return jnp.maximum(y, 0.0)


if __name__ == "__main__":
    # Shapes fixed by the module: x311 = randn(1, 384, 5, 5), conv 384->384 (1x3).
    N, Cin, Cout, H, W = 1, 384, 384, 5, 5
    key = jax.random.PRNGKey(0)
    kx, kw = jax.random.split(key)

    x = jax.random.normal(kx, (N, Cin, H, W), dtype=jnp.float32)
    # Deterministic synthetic conv weight (roughly kaiming scale), no bias.
    w = jax.random.normal(kw, (Cout, Cin, 1, 3), dtype=jnp.float32) * 0.042
    # BatchNorm2d affine params at their PyTorch init values.
    gamma = jnp.ones((Cout,), dtype=jnp.float32)
    beta = jnp.zeros((Cout,), dtype=jnp.float32)

    out = conv_bn_relu(x, w, gamma, beta, eps=1e-3)
    out = jax.block_until_ready(out)

    ref = jax.block_until_ready(reference(x, w, gamma, beta, eps=1e-3))
    assert out.shape == (N, Cout, H, W), out.shape
    assert jnp.allclose(out, ref, atol=2e-2, rtol=2e-2), (
        float(jnp.max(jnp.abs(out - ref))))

    print("KERNEL_OK")
</pallas_src>

<mosaic_0001>
module attributes {stable_mosaic.version = 11 : i64} {
  func.func @conv_bn_relu_kernel(%arg0: memref<32x1152xbf16, #tpu.memory_space<vmem>>, %arg1: memref<1152x384xbf16, #tpu.memory_space<vmem>>, %arg2: memref<1x384xf32, #tpu.memory_space<vmem>>, %arg3: memref<1x384xf32, #tpu.memory_space<vmem>>, %arg4: memref<32x384xf32, #tpu.memory_space<vmem>>) attributes {dimension_semantics = [], scalar_prefetch = 0 : i64, scratch_operands = 0 : i64, tpu.core_type = #tpu.core_type<tc>} {
    %c0 = arith.constant 0 : index
    %c0_0 = arith.constant 0 : index
    %0 = vector.load %arg0[%c0, %c0_0] : memref<32x1152xbf16, #tpu.memory_space<vmem>>, vector<32x1152xbf16>
    %c0_1 = arith.constant 0 : index
    %c0_2 = arith.constant 0 : index
    %1 = vector.load %arg1[%c0_1, %c0_2] : memref<1152x384xbf16, #tpu.memory_space<vmem>>, vector<1152x384xbf16>
    %cst = arith.constant dense<0.000000e+00> : vector<32x384xf32>
    %2 = tpu.matmul %0, %1, %cst {dimension_numbers = #tpu.dot_dimension_numbers<[1], [0], [0], [1], [0, 0, 1, 1], [], []>} : vector<32x1152xbf16>, vector<1152x384xbf16>, vector<32x384xf32> -> vector<32x384xf32>
    %cst_3 = arith.constant dense<0.000000e+00> : vector<384xf32>
    %3 = vector.multi_reduction <add>, %2, %cst_3 [0] : vector<32x384xf32> to vector<384xf32>
    %4 = vector.shape_cast %3 : vector<384xf32> to vector<1x384xf32>
    %5 = arith.mulf %2, %2 : vector<32x384xf32>
    %cst_4 = arith.constant dense<0.000000e+00> : vector<384xf32>
    %6 = vector.multi_reduction <add>, %5, %cst_4 [0] : vector<32x384xf32> to vector<384xf32>
    %7 = vector.shape_cast %6 : vector<384xf32> to vector<1x384xf32>
    %cst_5 = arith.constant 4.000000e-02 : f32
    %8 = vector.broadcast %cst_5 : f32 to vector<1x384xf32>
    %9 = arith.mulf %4, %8 : vector<1x384xf32>
    %cst_6 = arith.constant 4.000000e-02 : f32
    %10 = vector.broadcast %cst_6 : f32 to vector<1x384xf32>
    %11 = arith.mulf %7, %10 : vector<1x384xf32>
    %12 = arith.mulf %9, %9 : vector<1x384xf32>
    %13 = arith.subf %11, %12 : vector<1x384xf32>
    %cst_7 = arith.constant 1.000000e-03 : f32
    %14 = vector.broadcast %cst_7 : f32 to vector<1x384xf32>
    %15 = arith.addf %13, %14 : vector<1x384xf32>
    %16 = math.rsqrt %15 : vector<1x384xf32>
    %c0_8 = arith.constant 0 : index
    %c0_9 = arith.constant 0 : index
    %17 = vector.load %arg2[%c0_8, %c0_9] : memref<1x384xf32, #tpu.memory_space<vmem>>, vector<1x384xf32>
    %18 = arith.mulf %17, %16 : vector<1x384xf32>
    %c0_10 = arith.constant 0 : index
    %c0_11 = arith.constant 0 : index
    %19 = vector.load %arg3[%c0_10, %c0_11] : memref<1x384xf32, #tpu.memory_space<vmem>>, vector<1x384xf32>
    %20 = arith.mulf %9, %18 : vector<1x384xf32>
    %21 = arith.subf %19, %20 : vector<1x384xf32>
    %22 = vector.broadcast %18 : vector<1x384xf32> to vector<32x384xf32>
    %23 = arith.mulf %2, %22 : vector<32x384xf32>
    %24 = vector.broadcast %21 : vector<1x384xf32> to vector<32x384xf32>
    %25 = arith.addf %23, %24 : vector<32x384xf32>
    %cst_12 = arith.constant 0.000000e+00 : f32
    %26 = vector.broadcast %cst_12 : f32 to vector<32x384xf32>
    %27 = arith.maximumf %25, %26 : vector<32x384xf32>
    %c0_13 = arith.constant 0 : index
    %c0_14 = arith.constant 0 : index
    %28 = vector.load %arg4[%c0_13, %c0_14] : memref<32x384xf32, #tpu.memory_space<vmem>>, vector<32x384xf32>
    tpu.vector_store %arg4[%c0_13, %c0_14], %27 {strides = array<i32>} : memref<32x384xf32, #tpu.memory_space<vmem>>, vector<32x384xf32>,
    return
  }
}

</mosaic_0001>

<llo_original>
// kernel: conv_bn_relu.1
$region0: #{conv_bn_relu.1}
  #allocation0 [shape = 'u32[]', space=smem, size = 0x4, offset = 0x4, fixed_abs, tag = 'smem constant byte address 0x4 - core index']
  #allocation1 [shape = 'u32[144,128]{1,0:T(1,128)}', space=vmem, size = 0x12000, scoped, tag = 'internal scratch']
  %s0 = inlined_call_operand.vmem [shape: bf16[32,1152], index: 0, kind: input, shape index: {}]
  %s1 = inlined_call_operand.vmem [shape: bf16[1152,384], index: 1, kind: input, shape index: {}]
  %s2 = inlined_call_operand.vmem [shape: f32[1,384], index: 2, kind: input, shape index: {}]
  %s3 = inlined_call_operand.vmem [shape: f32[1,384], index: 3, kind: input, shape index: {}]
  %s4 = inlined_call_operand.vmem [shape: f32[32,384], index: 4, kind: output, shape index: {}]
  %s5 = sld [smem:[#allocation0]]
  $region26: #{conv_bn_relu.1} parent=0
    _
  %s7 = ssub.s32 1, %s5
  %s8 = scalar_select 0, %s7, %s5
  // Predicated region
  $region2: #{conv_bn_relu.1} parent=0 // pred_check
    _
  $region3: #{conv_bn_relu.1} parent=0 // pred_check_branch
    %10 = sbr.rel (0) target = $region5
  $region4: #{conv_bn_relu.1} parent=0 // pred_region
    _
  $region5: #{conv_bn_relu.1} parent=0 // pred_fallthru
    _
  // Predicated region
  $region6: #{conv_bn_relu.1} parent=0 // pred_check
    _
  $region7: #{conv_bn_relu.1} parent=0 // pred_check_branch
    %12 = sbr.rel (0) target = $region9
  $region8: #{conv_bn_relu.1} parent=0 // pred_region
    _
  $region9: #{conv_bn_relu.1} parent=0 // pred_fallthru
    _
  // Predicated region
  $region10: #{conv_bn_relu.1} parent=0 // pred_check
    _
  $region11: #{conv_bn_relu.1} parent=0 // pred_check_branch
    %14 = sbr.rel (0) target = $region13
  $region12: #{conv_bn_relu.1} parent=0 // pred_region
    _
  $region13: #{conv_bn_relu.1} parent=0 // pred_fallthru
    _
  // Predicated region
  $region14: #{conv_bn_relu.1} parent=0 // pred_check
    _
  $region15: #{conv_bn_relu.1} parent=0 // pred_check_branch
    %16 = sbr.rel (0) target = $region17
  $region16: #{conv_bn_relu.1} parent=0 // pred_region
    _
  $region17: #{conv_bn_relu.1} parent=0 // pred_fallthru
    _
  %v18 = vld [vmem:[%s0] sm:$0xff]
  %v19 = vld [vmem:[%s0 + $0x8] sm:$0xff]
  %v20 = vld [vmem:[%s0 + $0x10] sm:$0xff]
  %v21 = vld [vmem:[%s0 + $0x18] sm:$0xff]
  %v22 = vld [vmem:[%s0 + $0x20] sm:$0xf]
  %v23 = vld [vmem:[%s0 + $0x24] sm:$0xff]
  %v24 = vld [vmem:[%s0 + $0x2c] sm:$0xff]
  %v25 = vld [vmem:[%s0 + $0x34] sm:$0xff]
  %v26 = vld [vmem:[%s0 + $0x3c] sm:$0xff]
  %v27 = vld [vmem:[%s0 + $0x44] sm:$0xf]
  %v28 = vld [vmem:[%s0 + $0x48] sm:$0xff]
  %v29 = vld [vmem:[%s0 + $0x50] sm:$0xff]
  %v30 = vld [vmem:[%s0 + $0x58] sm:$0xff]
  %v31 = vld [vmem:[%s0 + $0x60] sm:$0xff]
  %v32 = vld [vmem:[%s0 + $0x68] sm:$0xf]
  %v33 = vld [vmem:[%s0 + $0x6c] sm:$0xff]
  %v34 = vld [vmem:[%s0 + $0x74] sm:$0xff]
  %v35 = vld [vmem:[%s0 + $0x7c] sm:$0xff]
  %v36 = vld [vmem:[%s0 + $0x84] sm:$0xff]
  %v37 = vld [vmem:[%s0 + $0x8c] sm:$0xf]
  %v38 = vld [vmem:[%s1] sm:$0xff]
  %v39 = vld [vmem:[%s1 + $0x8] sm:$0xf]
  %v40 = vld [vmem:[%s1 + $0xc] sm:$0xff]
  %v41 = vld [vmem:[%s1 + $0x14] sm:$0xf]
  %v42 = vld [vmem:[%s1 + $0x18] sm:$0xff]
  %v43 = vld [vmem:[%s1 + $0x20] sm:$0xf]
  %v44 = vld [vmem:[%s1 + $0x24] sm:$0xff]
  %v45 = vld [vmem:[%s1 + $0x2c] sm:$0xf]
  %v46 = vld [vmem:[%s1 + $0x30] sm:$0xff]
  %v47 = vld [vmem:[%s1 + $0x38] sm:$0xf]
  %v48 = vld [vmem:[%s1 + $0x3c] sm:$0xff]
  %v49 = vld [vmem:[%s1 + $0x44] sm:$0xf]
  %v50 = vld [vmem:[%s1 + $0x48] sm:$0xff]
  %v51 = vld [vmem:[%s1 + $0x50] sm:$0xf]
  %v52 = vld [vmem:[%s1 + $0x54] sm:$0xff]
  %v53 = vld [vmem:[%s1 + $0x5c] sm:$0xf]
  %v54 = vld [vmem:[%s1 + $0x60] sm:$0xff]
  %v55 = vld [vmem:[%s1 + $0x68] sm:$0xf]
  %v56 = vld [vmem:[%s1 + $0x6c] sm:$0xff]
  %v57 = vld [vmem:[%s1 + $0x74] sm:$0xf]
  %v58 = vld [vmem:[%s1 + $0x78] sm:$0xff]
  %v59 = vld [vmem:[%s1 + $0x80] sm:$0xf]
  %v60 = vld [vmem:[%s1 + $0x84] sm:$0xff]
  %v61 = vld [vmem:[%s1 + $0x8c] sm:$0xf]
  %v62 = vld [vmem:[%s1 + $0x90] sm:$0xff]
  %v63 = vld [vmem:[%s1 + $0x98] sm:$0xf]
  %v64 = vld [vmem:[%s1 + $0x9c] sm:$0xff]
  %v65 = vld [vmem:[%s1 + $0xa4] sm:$0xf]
  %v66 = vld [vmem:[%s1 + $0xa8] sm:$0xff]
  %v67 = vld [vmem:[%s1 + $0xb0] sm:$0xf]
  %v68 = vld [vmem:[%s1 + $0xb4] sm:$0xff]
  %v69 = vld [vmem:[%s1 + $0xbc] sm:$0xf]
  %v70 = vld [vmem:[%s1 + $0xc0] sm:$0xff]
  %v71 = vld [vmem:[%s1 + $0xc8] sm:$0xf]
  %v72 = vld [vmem:[%s1 + $0xcc] sm:$0xff]
  %v73 = vld [vmem:[%s1 + $0xd4] sm:$0xf]
  %v74 = vld [vmem:[%s1 + $0xd8] sm:$0xff]
  %v75 = vld [vmem:[%s1 + $0xe0] sm:$0xf]
  %v76 = vld [vmem:[%s1 + $0xe4] sm:$0xff]
  %v77 = vld [vmem:[%s1 + $0xec] sm:$0xf]
  %v78 = vld [vmem:[%s1 + $0xf0] sm:$0xff]
  %v79 = vld [vmem:[%s1 + $0xf8] sm:$0xf]
  %v80 = vld [vmem:[%s1 + $0xfc] sm:$0xff]
  %v81 = vld [vmem:[%s1 + $0x104] sm:$0xf]
  %v82 = vld [vmem:[%s1 + $0x108] sm:$0xff]
  %v83 = vld [vmem:[%s1 + $0x110] sm:$0xf]
  %v84 = vld [vmem:[%s1 + $0x114] sm:$0xff]
  %v85 = vld [vmem:[%s1 + $0x11c] sm:$0xf]
  %v86 = vld [vmem:[%s1 + $0x120] sm:$0xff]
  %v87 = vld [vmem:[%s1 + $0x128] sm:$0xf]
  %v88 = vld [vmem:[%s1 + $0x12c] sm:$0xff]
  %v89 = vld [vmem:[%s1 + $0x134] sm:$0xf]
  %v90 = vld [vmem:[%s1 + $0x138] sm:$0xff]
  %v91 = vld [vmem:[%s1 + $0x140] sm:$0xf]
  %v92 = vld [vmem:[%s1 + $0x144] sm:$0xff]
  %v93 = vld [vmem:[%s1 + $0x14c] sm:$0xf]
  %v94 = vld [vmem:[%s1 + $0x150] sm:$0xff]
  %v95 = vld [vmem:[%s1 + $0x158] sm:$0xf]
  %v96 = vld [vmem:[%s1 + $0x15c] sm:$0xff]
  %v97 = vld [vmem:[%s1 + $0x164] sm:$0xf]
  %v98 = vld [vmem:[%s1 + $0x168] sm:$0xff]
  %v99 = vld [vmem:[%s1 + $0x170] sm:$0xf]
  %v100 = vld [vmem:[%s1 + $0x174] sm:$0xff]
  %v101 = vld [vmem:[%s1 + $0x17c] sm:$0xf]
  %v102 = vld [vmem:[%s1 + $0x180] sm:$0xff]
  %v103 = vld [vmem:[%s1 + $0x188] sm:$0xf]
  %v104 = vld [vmem:[%s1 + $0x18c] sm:$0xff]
  %v105 = vld [vmem:[%s1 + $0x194] sm:$0xf]
  %v106 = vld [vmem:[%s1 + $0x198] sm:$0xff]
  %v107 = vld [vmem:[%s1 + $0x1a0] sm:$0xf]
  %v108 = vld [vmem:[%s1 + $0x1a4] sm:$0xff]
  %v109 = vld [vmem:[%s1 + $0x1ac] sm:$0xf]
  %v110 = vld [vmem:[%s1 + $0x1b0] sm:$0xff]
  %v111 = vld [vmem:[%s1 + $0x1b8] sm:$0xf]
  %v112 = vld [vmem:[%s1 + $0x1bc] sm:$0xff]
  %v113 = vld [vmem:[%s1 + $0x1c4] sm:$0xf]
  %v114 = vld [vmem:[%s1 + $0x1c8] sm:$0xff]
  %v115 = vld [vmem:[%s1 + $0x1d0] sm:$0xf]
  %v116 = vld [vmem:[%s1 + $0x1d4] sm:$0xff]
  %v117 = vld [vmem:[%s1 + $0x1dc] sm:$0xf]
  %v118 = vld [vmem:[%s1 + $0x1e0] sm:$0xff]
  %v119 = vld [vmem:[%s1 + $0x1e8] sm:$0xf]
  %v120 = vld [vmem:[%s1 + $0x1ec] sm:$0xff]
  %v121 = vld [vmem:[%s1 + $0x1f4] sm:$0xf]
  %v122 = vld [vmem:[%s1 + $0x1f8] sm:$0xff]
  %v123 = vld [vmem:[%s1 + $0x200] sm:$0xf]
  %v124 = vld [vmem:[%s1 + $0x204] sm:$0xff]
  %v125 = vld [vmem:[%s1 + $0x20c] sm:$0xf]
  %v126 = vld [vmem:[%s1 + $0x210] sm:$0xff]
  %v127 = vld [vmem:[%s1 + $0x218] sm:$0xf]
  %v128 = vld [vmem:[%s1 + $0x21c] sm:$0xff]
  %v129 = vld [vmem:[%s1 + $0x224] sm:$0xf]
  %v130 = vld [vmem:[%s1 + $0x228] sm:$0xff]
  %v131 = vld [vmem:[%s1 + $0x230] sm:$0xf]
  %v132 = vld [vmem:[%s1 + $0x234] sm:$0xff]
  %v133 = vld [vmem:[%s1 + $0x23c] sm:$0xf]
  %v134 = vld [vmem:[%s1 + $0x240] sm:$0xff]
  %v135 = vld [vmem:[%s1 + $0x248] sm:$0xf]
  %v136 = vld [vmem:[%s1 + $0x24c] sm:$0xff]
  %v137 = vld [vmem:[%s1 + $0x254] sm:$0xf]
  %v138 = vld [vmem:[%s1 + $0x258] sm:$0xff]
  %v139 = vld [vmem:[%s1 + $0x260] sm:$0xf]
  %v140 = vld [vmem:[%s1 + $0x264] sm:$0xff]
  %v141 = vld [vmem:[%s1 + $0x26c] sm:$0xf]
  %v142 = vld [vmem:[%s1 + $0x270] sm:$0xff]
  %v143 = vld [vmem:[%s1 + $0x278] sm:$0xf]
  %v144 = vld [vmem:[%s1 + $0x27c] sm:$0xff]
  %v145 = vld [vmem:[%s1 + $0x284] sm:$0xf]
  %v146 = vld [vmem:[%s1 + $0x288] sm:$0xff]
  %v147 = vld [vmem:[%s1 + $0x290] sm:$0xf]
  %v148 = vld [vmem:[%s1 + $0x294] sm:$0xff]
  %v149 = vld [vmem:[%s1 + $0x29c] sm:$0xf]
  %v150 = vld [vmem:[%s1 + $0x2a0] sm:$0xff]
  %v151 = vld [vmem:[%s1 + $0x2a8] sm:$0xf]
  %v152 = vld [vmem:[%s1 + $0x2ac] sm:$0xff]
  %v153 = vld [vmem:[%s1 + $0x2b4] sm:$0xf]
  %v154 = vld [vmem:[%s1 + $0x2b8] sm:$0xff]
  %v155 = vld [vmem:[%s1 + $0x2c0] sm:$0xf]
  %v156 = vld [vmem:[%s1 + $0x2c4] sm:$0xff]
  %v157 = vld [vmem:[%s1 + $0x2cc] sm:$0xf]
  %v158 = vld [vmem:[%s1 + $0x2d0] sm:$0xff]
  %v159 = vld [vmem:[%s1 + $0x2d8] sm:$0xf]
  %v160 = vld [vmem:[%s1 + $0x2dc] sm:$0xff]
  %v161 = vld [vmem:[%s1 + $0x2e4] sm:$0xf]
  %v162 = vld [vmem:[%s1 + $0x2e8] sm:$0xff]
  %v163 = vld [vmem:[%s1 + $0x2f0] sm:$0xf]
  %v164 = vld [vmem:[%s1 + $0x2f4] sm:$0xff]
  %v165 = vld [vmem:[%s1 + $0x2fc] sm:$0xf]
  %v166 = vld [vmem:[%s1 + $0x300] sm:$0xff]
  %v167 = vld [vmem:[%s1 + $0x308] sm:$0xf]
  %v168 = vld [vmem:[%s1 + $0x30c] sm:$0xff]
  %v169 = vld [vmem:[%s1 + $0x314] sm:$0xf]
  %v170 = vld [vmem:[%s1 + $0x318] sm:$0xff]
  %v171 = vld [vmem:[%s1 + $0x320] sm:$0xf]
  %v172 = vld [vmem:[%s1 + $0x324] sm:$0xff]
  %v173 = vld [vmem:[%s1 + $0x32c] sm:$0xf]
  %v174 = vld [vmem:[%s1 + $0x330] sm:$0xff]
  %v175 = vld [vmem:[%s1 + $0x338] sm:$0xf]
  %v176 = vld [vmem:[%s1 + $0x33c] sm:$0xff]
  %v177 = vld [vmem:[%s1 + $0x344] sm:$0xf]
  %v178 = vld [vmem:[%s1 + $0x348] sm:$0xff]
  %v179 = vld [vmem:[%s1 + $0x350] sm:$0xf]
  %v180 = vld [vmem:[%s1 + $0x354] sm:$0xff]
  %v181 = vld [vmem:[%s1 + $0x35c] sm:$0xf]
  %v182 = vld [vmem:[%s1 + $0x360] sm:$0xff]
  %v183 = vld [vmem:[%s1 + $0x368] sm:$0xf]
  %v184 = vld [vmem:[%s1 + $0x36c] sm:$0xff]
  %v185 = vld [vmem:[%s1 + $0x374] sm:$0xf]
  %v186 = vld [vmem:[%s1 + $0x378] sm:$0xff]
  %v187 = vld [vmem:[%s1 + $0x380] sm:$0xf]
  %v188 = vld [vmem:[%s1 + $0x384] sm:$0xff]
  %v189 = vld [vmem:[%s1 + $0x38c] sm:$0xf]
  %v190 = vld [vmem:[%s1 + $0x390] sm:$0xff]
  %v191 = vld [vmem:[%s1 + $0x398] sm:$0xf]
  %v192 = vld [vmem:[%s1 + $0x39c] sm:$0xff]
  %v193 = vld [vmem:[%s1 + $0x3a4] sm:$0xf]
  %v194 = vld [vmem:[%s1 + $0x3a8] sm:$0xff]
  %v195 = vld [vmem:[%s1 + $0x3b0] sm:$0xf]
  %v196 = vld [vmem:[%s1 + $0x3b4] sm:$0xff]
  %v197 = vld [vmem:[%s1 + $0x3bc] sm:$0xf]
  %v198 = vld [vmem:[%s1 + $0x3c0] sm:$0xff]
  %v199 = vld [vmem:[%s1 + $0x3c8] sm:$0xf]
  %v200 = vld [vmem:[%s1 + $0x3cc] sm:$0xff]
  %v201 = vld [vmem:[%s1 + $0x3d4] sm:$0xf]
  %v202 = vld [vmem:[%s1 + $0x3d8] sm:$0xff]
  %v203 = vld [vmem:[%s1 + $0x3e0] sm:$0xf]
  %v204 = vld [vmem:[%s1 + $0x3e4] sm:$0xff]
  %v205 = vld [vmem:[%s1 + $0x3ec] sm:$0xf]
  %v206 = vld [vmem:[%s1 + $0x3f0] sm:$0xff]
  %v207 = vld [vmem:[%s1 + $0x3f8] sm:$0xf]
  %v208 = vld [vmem:[%s1 + $0x3fc] sm:$0xff]
  %v209 = vld [vmem:[%s1 + $0x404] sm:$0xf]
  %v210 = vld [vmem:[%s1 + $0x408] sm:$0xff]
  %v211 = vld [vmem:[%s1 + $0x410] sm:$0xf]
  %v212 = vld [vmem:[%s1 + $0x414] sm:$0xff]
  %v213 = vld [vmem:[%s1 + $0x41c] sm:$0xf]
  %v214 = vld [vmem:[%s1 + $0x420] sm:$0xff]
  %v215 = vld [vmem:[%s1 + $0x428] sm:$0xf]
  %v216 = vld [vmem:[%s1 + $0x42c] sm:$0xff]
  %v217 = vld [vmem:[%s1 + $0x434] sm:$0xf]
  %v218 = vld [vmem:[%s1 + $0x438] sm:$0xff]
  %v219 = vld [vmem:[%s1 + $0x440] sm:$0xf]
  %v220 = vld [vmem:[%s1 + $0x444] sm:$0xff]
  %v221 = vld [vmem:[%s1 + $0x44c] sm:$0xf]
  %v222 = vld [vmem:[%s1 + $0x450] sm:$0xff]
  %v223 = vld [vmem:[%s1 + $0x458] sm:$0xf]
  %v224 = vld [vmem:[%s1 + $0x45c] sm:$0xff]
  %v225 = vld [vmem:[%s1 + $0x464] sm:$0xf]
  %v226 = vld [vmem:[%s1 + $0x468] sm:$0xff]
  %v227 = vld [vmem:[%s1 + $0x470] sm:$0xf]
  %v228 = vld [vmem:[%s1 + $0x474] sm:$0xff]
  %v229 = vld [vmem:[%s1 + $0x47c] sm:$0xf]
  %v230 = vld [vmem:[%s1 + $0x480] sm:$0xff]
  %v231 = vld [vmem:[%s1 + $0x488] sm:$0xf]
  %v232 = vld [vmem:[%s1 + $0x48c] sm:$0xff]
  %v233 = vld [vmem:[%s1 + $0x494] sm:$0xf]
  %v234 = vld [vmem:[%s1 + $0x498] sm:$0xff]
  %v235 = vld [vmem:[%s1 + $0x4a0] sm:$0xf]
  %v236 = vld [vmem:[%s1 + $0x4a4] sm:$0xff]
  %v237 = vld [vmem:[%s1 + $0x4ac] sm:$0xf]
  %v238 = vld [vmem:[%s1 + $0x4b0] sm:$0xff]
  %v239 = vld [vmem:[%s1 + $0x4b8] sm:$0xf]
  %v240 = vld [vmem:[%s1 + $0x4bc] sm:$0xff]
  %v241 = vld [vmem:[%s1 + $0x4c4] sm:$0xf]
  %v242 = vld [vmem:[%s1 + $0x4c8] sm:$0xff]
  %v243 = vld [vmem:[%s1 + $0x4d0] sm:$0xf]
  %v244 = vld [vmem:[%s1 + $0x4d4] sm:$0xff]
  %v245 = vld [vmem:[%s1 + $0x4dc] sm:$0xf]
  %v246 = vld [vmem:[%s1 + $0x4e0] sm:$0xff]
  %v247 = vld [vmem:[%s1 + $0x4e8] sm:$0xf]
  %v248 = vld [vmem:[%s1 + $0x4ec] sm:$0xff]
  %v249 = vld [vmem:[%s1 + $0x4f4] sm:$0xf]
  %v250 = vld [vmem:[%s1 + $0x4f8] sm:$0xff]
  %v251 = vld [vmem:[%s1 + $0x500] sm:$0xf]
  %v252 = vld [vmem:[%s1 + $0x504] sm:$0xff]
  %v253 = vld [vmem:[%s1 + $0x50c] sm:$0xf]
  %v254 = vld [vmem:[%s1 + $0x510] sm:$0xff]
  %v255 = vld [vmem:[%s1 + $0x518] sm:$0xf]
  %v256 = vld [vmem:[%s1 + $0x51c] sm:$0xff]
  %v257 = vld [vmem:[%s1 + $0x524] sm:$0xf]
  %v258 = vld [vmem:[%s1 + $0x528] sm:$0xff]
  %v259 = vld [vmem:[%s1 + $0x530] sm:$0xf]
  %v260 = vld [vmem:[%s1 + $0x534] sm:$0xff]
  %v261 = vld [vmem:[%s1 + $0x53c] sm:$0xf]
  %v262 = vld [vmem:[%s1 + $0x540] sm:$0xff]
  %v263 = vld [vmem:[%s1 + $0x548] sm:$0xf]
  %v264 = vld [vmem:[%s1 + $0x54c] sm:$0xff]
  %v265 = vld [vmem:[%s1 + $0x554] sm:$0xf]
  %v266 = vld [vmem:[%s1 + $0x558] sm:$0xff]
  %v267 = vld [vmem:[%s1 + $0x560] sm:$0xf]
  %v268 = vld [vmem:[%s1 + $0x564] sm:$0xff]
  %v269 = vld [vmem:[%s1 + $0x56c] sm:$0xf]
  %v270 = vld [vmem:[%s1 + $0x570] sm:$0xff]
  %v271 = vld [vmem:[%s1 + $0x578] sm:$0xf]
  %v272 = vld [vmem:[%s1 + $0x57c] sm:$0xff]
  %v273 = vld [vmem:[%s1 + $0x584] sm:$0xf]
  %v274 = vld [vmem:[%s1 + $0x588] sm:$0xff]
  %v275 = vld [vmem:[%s1 + $0x590] sm:$0xf]
  %v276 = vld [vmem:[%s1 + $0x594] sm:$0xff]
  %v277 = vld [vmem:[%s1 + $0x59c] sm:$0xf]
  %v278 = vld [vmem:[%s1 + $0x5a0] sm:$0xff]
  %v279 = vld [vmem:[%s1 + $0x5a8] sm:$0xf]
  %v280 = vld [vmem:[%s1 + $0x5ac] sm:$0xff]
  %v281 = vld [vmem:[%s1 + $0x5b4] sm:$0xf]
  %v282 = vld [vmem:[%s1 + $0x5b8] sm:$0xff]
  %v283 = vld [vmem:[%s1 + $0x5c0] sm:$0xf]
  %v284 = vld [vmem:[%s1 + $0x5c4] sm:$0xff]
  %v285 = vld [vmem:[%s1 + $0x5cc] sm:$0xf]
  %v286 = vld [vmem:[%s1 + $0x5d0] sm:$0xff]
  %v287 = vld [vmem:[%s1 + $0x5d8] sm:$0xf]
  %v288 = vld [vmem:[%s1 + $0x5dc] sm:$0xff]
  %v289 = vld [vmem:[%s1 + $0x5e4] sm:$0xf]
  %v290 = vld [vmem:[%s1 + $0x5e8] sm:$0xff]
  %v291 = vld [vmem:[%s1 + $0x5f0] sm:$0xf]
  %v292 = vld [vmem:[%s1 + $0x5f4] sm:$0xff]
  %v293 = vld [vmem:[%s1 + $0x5fc] sm:$0xf]
  %v294 = vld [vmem:[%s1 + $0x600] sm:$0xff]
  %v295 = vld [vmem:[%s1 + $0x608] sm:$0xf]
  %v296 = vld [vmem:[%s1 + $0x60c] sm:$0xff]
  %v297 = vld [vmem:[%s1 + $0x614] sm:$0xf]
  %v298 = vld [vmem:[%s1 + $0x618] sm:$0xff]
  %v299 = vld [vmem:[%s1 + $0x620] sm:$0xf]
  %v300 = vld [vmem:[%s1 + $0x624] sm:$0xff]
  %v301 = vld [vmem:[%s1 + $0x62c] sm:$0xf]
  %v302 = vld [vmem:[%s1 + $0x630] sm:$0xff]
  %v303 = vld [vmem:[%s1 + $0x638] sm:$0xf]
  %v304 = vld [vmem:[%s1 + $0x63c] sm:$0xff]
  %v305 = vld [vmem:[%s1 + $0x644] sm:$0xf]
  %v306 = vld [vmem:[%s1 + $0x648] sm:$0xff]
  %v307 = vld [vmem:[%s1 + $0x650] sm:$0xf]
  %v308 = vld [vmem:[%s1 + $0x654] sm:$0xff]
  %v309 = vld [vmem:[%s1 + $0x65c] sm:$0xf]
  %v310 = vld [vmem:[%s1 + $0x660] sm:$0xff]
  %v311 = vld [vmem:[%s1 + $0x668] sm:$0xf]
  %v312 = vld [vmem:[%s1 + $0x66c] sm:$0xff]
  %v313 = vld [vmem:[%s1 + $0x674] sm:$0xf]
  %v314 = vld [vmem:[%s1 + $0x678] sm:$0xff]
  %v315 = vld [vmem:[%s1 + $0x680] sm:$0xf]
  %v316 = vld [vmem:[%s1 + $0x684] sm:$0xff]
  %v317 = vld [vmem:[%s1 + $0x68c] sm:$0xf]
  %v318 = vld [vmem:[%s1 + $0x690] sm:$0xff]
  %v319 = vld [vmem:[%s1 + $0x698] sm:$0xf]
  %v320 = vld [vmem:[%s1 + $0x69c] sm:$0xff]
  %v321 = vld [vmem:[%s1 + $0x6a4] sm:$0xf]
  %v322 = vld [vmem:[%s1 + $0x6a8] sm:$0xff]
  %v323 = vld [vmem:[%s1 + $0x6b0] sm:$0xf]
  %v324 = vld [vmem:[%s1 + $0x6b4] sm:$0xff]
  %v325 = vld [vmem:[%s1 + $0x6bc] sm:$0xf]
  %v346 = vunpack.c.l.b16 %v18
  %v347 = vunpack.c.h.b16 %v18
  %v348 = vunpack.c.l.b16 %v19
  %v349 = vunpack.c.h.b16 %v19
  %v350 = vunpack.c.l.b16 %v20
  %v351 = vunpack.c.h.b16 %v20
  %v352 = vunpack.c.l.b16 %v21
  %v353 = vunpack.c.h.b16 %v21
  %v354 = vunpack.c.l.b16 %v22
  %v355 = vunpack.c.l.b16 %v23
  %v356 = vunpack.c.h.b16 %v23
  %v357 = vunpack.c.l.b16 %v24
  %v358 = vunpack.c.h.b16 %v24
  %v359 = vunpack.c.l.b16 %v25
  %v360 = vunpack.c.h.b16 %v25
  %v361 = vunpack.c.l.b16 %v26
  %v362 = vunpack.c.h.b16 %v26
  %v363 = vunpack.c.l.b16 %v27
  %v364 = vunpack.c.l.b16 %v28
  %v365 = vunpack.c.h.b16 %v28
  %v366 = vunpack.c.l.b16 %v29
  %v367 = vunpack.c.h.b16 %v29
  %v368 = vunpack.c.l.b16 %v30
  %v369 = vunpack.c.h.b16 %v30
  %v370 = vunpack.c.l.b16 %v31
  %v371 = vunpack.c.h.b16 %v31
  %v372 = vunpack.c.l.b16 %v32
  %v373 = vunpack.c.l.b16 %v33
  %v374 = vunpack.c.h.b16 %v33
  %v375 = vunpack.c.l.b16 %v34
  %v376 = vunpack.c.h.b16 %v34
  %v377 = vunpack.c.l.b16 %v35
  %v378 = vunpack.c.h.b16 %v35
  %v379 = vunpack.c.l.b16 %v36
  %v380 = vunpack.c.h.b16 %v36
  %v381 = vunpack.c.l.b16 %v37
  %v382 = vpack.c.b16 %v355, %v346
  %v383 = vpack.c.b16 %v356, %v347
  %v384 = vpack.c.b16 %v357, %v348
  %v385 = vpack.c.b16 %v358, %v349
  %v386 = vpack.c.b16 %v359, %v350
  %v387 = vpack.c.b16 %v360, %v351
  %v388 = vpack.c.b16 %v361, %v352
  %v389 = vpack.c.b16 %v362, %v353
  %v390 = vpack.c.b16 %v363, %v354
  %v391 = vpack.c.b16 %v373, %v364
  %v392 = vpack.c.b16 %v374, %v365
  %v393 = vpack.c.b16 %v375, %v366
  %v394 = vpack.c.b16 %v376, %v367
  %v395 = vpack.c.b16 %v377, %v368
  %v396 = vpack.c.b16 %v378, %v369
  %v397 = vpack.c.b16 %v379, %v370
  %v398 = vpack.c.b16 %v380, %v371
  %v399 = vpack.c.b16 %v381, %v372
  %v706 = vunpack.c.l.b16 %v38
  %v707 = vunpack.c.h.b16 %v38
  %v708 = vunpack.c.l.b16 %v39
  %v709 = vunpack.c.l.b16 %v40
  %v710 = vunpack.c.h.b16 %v40
  %v711 = vunpack.c.l.b16 %v41
  %v712 = vunpack.c.l.b16 %v42
  %v713 = vunpack.c.h.b16 %v42
  %v714 = vunpack.c.l.b16 %v43
  %v715 = vunpack.c.l.b16 %v44
  %v716 = vunpack.c.h.b16 %v44
  %v717 = vunpack.c.l.b16 %v45
  %v718 = vunpack.c.l.b16 %v46
  %v719 = vunpack.c.h.b16 %v46
  %v720 = vunpack.c.l.b16 %v47
  %v721 = vunpack.c.l.b16 %v48
  %v722 = vunpack.c.h.b16 %v48
  %v723 = vunpack.c.l.b16 %v49
  %v724 = vunpack.c.l.b16 %v50
  %v725 = vunpack.c.h.b16 %v50
  %v726 = vunpack.c.l.b16 %v51
  %v727 = vunpack.c.l.b16 %v52
  %v728 = vunpack.c.h.b16 %v52
  %v729 = vunpack.c.l.b16 %v53
  %v730 = vunpack.c.l.b16 %v54
  %v731 = vunpack.c.h.b16 %v54
  %v732 = vunpack.c.l.b16 %v55
  %v733 = vunpack.c.l.b16 %v56
  %v734 = vunpack.c.h.b16 %v56
  %v735 = vunpack.c.l.b16 %v57
  %v736 = vunpack.c.l.b16 %v58
  %v737 = vunpack.c.h.b16 %v58
  %v738 = vunpack.c.l.b16 %v59
  %v739 = vunpack.c.l.b16 %v60
  %v740 = vunpack.c.h.b16 %v60
  %v741 = vunpack.c.l.b16 %v61
  %v742 = vunpack.c.l.b16 %v62
  %v743 = vunpack.c.h.b16 %v62
  %v744 = vunpack.c.l.b16 %v63
  %v745 = vunpack.c.l.b16 %v64
  %v746 = vunpack.c.h.b16 %v64
  %v747 = vunpack.c.l.b16 %v65
  %v748 = vunpack.c.l.b16 %v66
  %v749 = vunpack.c.h.b16 %v66
  %v750 = vunpack.c.l.b16 %v67
  %v751 = vunpack.c.l.b16 %v68
  %v752 = vunpack.c.h.b16 %v68
  %v753 = vunpack.c.l.b16 %v69
  %v754 = vunpack.c.l.b16 %v70
  %v755 = vunpack.c.h.b16 %v70
  %v756 = vunpack.c.l.b16 %v71
  %v757 = vunpack.c.l.b16 %v72
  %v758 = vunpack.c.h.b16 %v72
  %v759 = vunpack.c.l.b16 %v73
  %v760 = vunpack.c.l.b16 %v74
  %v761 = vunpack.c.h.b16 %v74
  %v762 = vunpack.c.l.b16 %v75
  %v763 = vunpack.c.l.b16 %v76
  %v764 = vunpack.c.h.b16 %v76
  %v765 = vunpack.c.l.b16 %v77
  %v766 = vunpack.c.l.b16 %v78
  %v767 = vunpack.c.h.b16 %v78
  %v768 = vunpack.c.l.b16 %v79
  %v769 = vunpack.c.l.b16 %v80
  %v770 = vunpack.c.h.b16 %v80
  %v771 = vunpack.c.l.b16 %v81
  %v772 = vunpack.c.l.b16 %v82
  %v773 = vunpack.c.h.b16 %v82
  %v774 = vunpack.c.l.b16 %v83
  %v775 = vunpack.c.l.b16 %v84
  %v776 = vunpack.c.h.b16 %v84
  %v777 = vunpack.c.l.b16 %v85
  %v778 = vunpack.c.l.b16 %v86
  %v779 = vunpack.c.h.b16 %v86
  %v780 = vunpack.c.l.b16 %v87
  %v781 = vunpack.c.l.b16 %v88
  %v782 = vunpack.c.h.b16 %v88
  %v783 = vunpack.c.l.b16 %v89
  %v784 = vunpack.c.l.b16 %v90
  %v785 = vunpack.c.h.b16 %v90
  %v786 = vunpack.c.l.b16 %v91
  %v787 = vunpack.c.l.b16 %v92
  %v788 = vunpack.c.h.b16 %v92
  %v789 = vunpack.c.l.b16 %v93
  %v790 = vunpack.c.l.b16 %v94
  %v791 = vunpack.c.h.b16 %v94
  %v792 = vunpack.c.l.b16 %v95
  %v793 = vunpack.c.l.b16 %v96
  %v794 = vunpack.c.h.b16 %v96
  %v795 = vunpack.c.l.b16 %v97
  %v796 = vunpack.c.l.b16 %v98
  %v797 = vunpack.c.h.b16 %v98
  %v798 = vunpack.c.l.b16 %v99
  %v799 = vunpack.c.l.b16 %v100
  %v800 = vunpack.c.h.b16 %v100
  %v801 = vunpack.c.l.b16 %v101
  %v802 = vunpack.c.l.b16 %v102
  %v803 = vunpack.c.h.b16 %v102
  %v804 = vunpack.c.l.b16 %v103
  %v805 = vunpack.c.l.b16 %v104
  %v806 = vunpack.c.h.b16 %v104
  %v807 = vunpack.c.l.b16 %v105
  %v808 = vunpack.c.l.b16 %v106
  %v809 = vunpack.c.h.b16 %v106
  %v810 = vunpack.c.l.b16 %v107
  %v811 = vunpack.c.l.b16 %v108
  %v812 = vunpack.c.h.b16 %v108
  %v813 = vunpack.c.l.b16 %v109
  %v814 = vunpack.c.l.b16 %v110
  %v815 = vunpack.c.h.b16 %v110
  %v816 = vunpack.c.l.b16 %v111
  %v817 = vunpack.c.l.b16 %v112
  %v818 = vunpack.c.h.b16 %v112
  %v819 = vunpack.c.l.b16 %v113
  %v820 = vunpack.c.l.b16 %v114
  %v821 = vunpack.c.h.b16 %v114
  %v822 = vunpack.c.l.b16 %v115
  %v823 = vunpack.c.l.b16 %v116
  %v824 = vunpack.c.h.b16 %v116
  %v825 = vunpack.c.l.b16 %v117
  %v826 = vunpack.c.l.b16 %v118
  %v827 = vunpack.c.h.b16 %v118
  %v828 = vunpack.c.l.b16 %v119
  %v829 = vunpack.c.l.b16 %v120
  %v830 = vunpack.c.h.b16 %v120
  %v831 = vunpack.c.l.b16 %v121
  %v832 = vunpack.c.l.b16 %v122
  %v833 = vunpack.c.h.b16 %v122
  %v834 = vunpack.c.l.b16 %v123
  %v835 = vunpack.c.l.b16 %v124
  %v836 = vunpack.c.h.b16 %v124
  %v837 = vunpack.c.l.b16 %v125
  %v838 = vunpack.c.l.b16 %v126
  %v839 = vunpack.c.h.b16 %v126
  %v840 = vunpack.c.l.b16 %v127
  %v841 = vunpack.c.l.b16 %v128
  %v842 = vunpack.c.h.b16 %v128
  %v843 = vunpack.c.l.b16 %v129
  %v844 = vunpack.c.l.b16 %v130
  %v845 = vunpack.c.h.b16 %v130
  %v846 = vunpack.c.l.b16 %v131
  %v847 = vunpack.c.l.b16 %v132
  %v848 = vunpack.c.h.b16 %v132
  %v849 = vunpack.c.l.b16 %v133
  %v850 = vunpack.c.l.b16 %v134
  %v851 = vunpack.c.h.b16 %v134
  %v852 = vunpack.c.l.b16 %v135
  %v853 = vunpack.c.l.b16 %v136
  %v854 = vunpack.c.h.b16 %v136
  %v855 = vunpack.c.l.b16 %v137
  %v856 = vunpack.c.l.b16 %v138
  %v857 = vunpack.c.h.b16 %v138
  %v858 = vunpack.c.l.b16 %v139
  %v859 = vunpack.c.l.b16 %v140
  %v860 = vunpack.c.h.b16 %v140
  %v861 = vunpack.c.l.b16 %v141
  %v862 = vunpack.c.l.b16 %v142
  %v863 = vunpack.c.h.b16 %v142
  %v864 = vunpack.c.l.b16 %v143
  %v865 = vunpack.c.l.b16 %v144
  %v866 = vunpack.c.h.b16 %v144
  %v867 = vunpack.c.l.b16 %v145
  %v868 = vunpack.c.l.b16 %v146
  %v869 = vunpack.c.h.b16 %v146
  %v870 = vunpack.c.l.b16 %v147
  %v871 = vunpack.c.l.b16 %v148
  %v872 = vunpack.c.h.b16 %v148
  %v873 = vunpack.c.l.b16 %v149
  %v874 = vunpack.c.l.b16 %v150
  %v875 = vunpack.c.h.b16 %v150
  %v876 = vunpack.c.l.b16 %v151
  %v877 = vunpack.c.l.b16 %v152
  %v878 = vunpack.c.h.b16 %v152
  %v879 = vunpack.c.l.b16 %v153
  %v880 = vunpack.c.l.b16 %v154
  %v881 = vunpack.c.h.b16 %v154
  %v882 = vunpack.c.l.b16 %v155
  %v883 = vunpack.c.l.b16 %v156
  %v884 = vunpack.c.h.b16 %v156
  %v885 = vunpack.c.l.b16 %v157
  %v886 = vunpack.c.l.b16 %v158
  %v887 = vunpack.c.h.b16 %v158
  %v888 = vunpack.c.l.b16 %v159
  %v889 = vunpack.c.l.b16 %v160
  %v890 = vunpack.c.h.b16 %v160
  %v891 = vunpack.c.l.b16 %v161
  %v892 = vunpack.c.l.b16 %v162
  %v893 = vunpack.c.h.b16 %v162
  %v894 = vunpack.c.l.b16 %v163
  %v895 = vunpack.c.l.b16 %v164
  %v896 = vunpack.c.h.b16 %v164
  %v897 = vunpack.c.l.b16 %v165
  %v898 = vunpack.c.l.b16 %v166
  %v899 = vunpack.c.h.b16 %v166
  %v900 = vunpack.c.l.b16 %v167
  %v901 = vunpack.c.l.b16 %v168
  %v902 = vunpack.c.h.b16 %v168
  %v903 = vunpack.c.l.b16 %v169
  %v904 = vunpack.c.l.b16 %v170
  %v905 = vunpack.c.h.b16 %v170
  %v906 = vunpack.c.l.b16 %v171
  %v907 = vunpack.c.l.b16 %v172
  %v908 = vunpack.c.h.b16 %v172
  %v909 = vunpack.c.l.b16 %v173
  %v910 = vunpack.c.l.b16 %v174
  %v911 = vunpack.c.h.b16 %v174
  %v912 = vunpack.c.l.b16 %v175
  %v913 = vunpack.c.l.b16 %v176
  %v914 = vunpack.c.h.b16 %v176
  %v915 = vunpack.c.l.b16 %v177
  %v916 = vunpack.c.l.b16 %v178
  %v917 = vunpack.c.h.b16 %v178
  %v918 = vunpack.c.l.b16 %v179
  %v919 = vunpack.c.l.b16 %v180
  %v920 = vunpack.c.h.b16 %v180
  %v921 = vunpack.c.l.b16 %v181
  %v922 = vunpack.c.l.b16 %v182
  %v923 = vunpack.c.h.b16 %v182
  %v924 = vunpack.c.l.b16 %v183
  %v925 = vunpack.c.l.b16 %v184
  %v926 = vunpack.c.h.b16 %v184
  %v927 = vunpack.c.l.b16 %v185
  %v928 = vunpack.c.l.b16 %v186
  %v929 = vunpack.c.h.b16 %v186
  %v930 = vunpack.c.l.b16 %v187
  %v931 = vunpack.c.l.b16 %v188
  %v932 = vunpack.c.h.b16 %v188
  %v933 = vunpack.c.l.b16 %v189
  %v934 = vunpack.c.l.b16 %v190
  %v935 = vunpack.c.h.b16 %v190
  %v936 = vunpack.c.l.b16 %v191
  %v937 = vunpack.c.l.b16 %v192
  %v938 = vunpack.c.h.b16 %v192
  %v939 = vunpack.c.l.b16 %v193
  %v940 = vunpack.c.l.b16 %v194
  %v941 = vunpack.c.h.b16 %v194
  %v942 = vunpack.c.l.b16 %v195
  %v943 = vunpack.c.l.b16 %v196
  %v944 = vunpack.c.h.b16 %v196
  %v945 = vunpack.c.l.b16 %v197
  %v946 = vunpack.c.l.b16 %v198
  %v947 = vunpack.c.h.b16 %v198
  %v948 = vunpack.c.l.b16 %v199
  %v949 = vunpack.c.l.b16 %v200
  %v950 = vunpack.c.h.b16 %v200
  %v951 = vunpack.c.l.b16 %v201
  %v952 = vunpack.c.l.b16 %v202
  %v953 = vunpack.c.h.b16 %v202
  %v954 = vunpack.c.l.b16 %v203
  %v955 = vunpack.c.l.b16 %v204
  %v956 = vunpack.c.h.b16 %v204
  %v957 = vunpack.c.l.b16 %v205
  %v958 = vunpack.c.l.b16 %v206
  %v959 = vunpack.c.h.b16 %v206
  %v960 = vunpack.c.l.b16 %v207
  %v961 = vunpack.c.l.b16 %v208
  %v962 = vunpack.c.h.b16 %v208
  %v963 = vunpack.c.l.b16 %v209
  %v964 = vunpack.c.l.b16 %v210
  %v965 = vunpack.c.h.b16 %v210
  %v966 = vunpack.c.l.b16 %v211
  %v967 = vunpack.c.l.b16 %v212
  %v968 = vunpack.c.h.b16 %v212
  %v969 = vunpack.c.l.b16 %v213
  %v970 = vunpack.c.l.b16 %v214
  %v971 = vunpack.c.h.b16 %v214
  %v972 = vunpack.c.l.b16 %v215
  %v973 = vunpack.c.l.b16 %v216
  %v974 = vunpack.c.h.b16 %v216
  %v975 = vunpack.c.l.b16 %v217
  %v976 = vunpack.c.l.b16 %v218
  %v977 = vunpack.c.h.b16 %v218
  %v978 = vunpack.c.l.b16 %v219
  %v979 = vunpack.c.l.b16 %v220
  %v980 = vunpack.c.h.b16 %v220
  %v981 = vunpack.c.l.b16 %v221
  %v982 = vunpack.c.l.b16 %v222
  %v983 = vunpack.c.h.b16 %v222
  %v984 = vunpack.c.l.b16 %v223
  %v985 = vunpack.c.l.b16 %v224
  %v986 = vunpack.c.h.b16 %v224
  %v987 = vunpack.c.l.b16 %v225
  %v988 = vunpack.c.l.b16 %v226
  %v989 = vunpack.c.h.b16 %v226
  %v990 = vunpack.c.l.b16 %v227
  %v991 = vunpack.c.l.b16 %v228
  %v992 = vunpack.c.h.b16 %v228
  %v993 = vunpack.c.l.b16 %v229
  %v994 = vunpack.c.l.b16 %v230
  %v995 = vunpack.c.h.b16 %v230
  %v996 = vunpack.c.l.b16 %v231
  %v997 = vunpack.c.l.b16 %v232
  %v998 = vunpack.c.h.b16 %v232
  %v999 = vunpack.c.l.b16 %v233
  %v1000 = vunpack.c.l.b16 %v234
  %v1001 = vunpack.c.h.b16 %v234
  %v1002 = vunpack.c.l.b16 %v235
  %v1003 = vunpack.c.l.b16 %v236
  %v1004 = vunpack.c.h.b16 %v236
  %v1005 = vunpack.c.l.b16 %v237
  %v1006 = vunpack.c.l.b16 %v238
  %v1007 = vunpack.c.h.b16 %v238
  %v1008 = vunpack.c.l.b16 %v239
  %v1009 = vunpack.c.l.b16 %v240
  %v1010 = vunpack.c.h.b16 %v240
  %v1011 = vunpack.c.l.b16 %v241
  %v1012 = vunpack.c.l.b16 %v242
  %v1013 = vunpack.c.h.b16 %v242
  %v1014 = vunpack.c.l.b16 %v243
  %v1015 = vunpack.c.l.b16 %v244
  %v1016 = vunpack.c.h.b16 %v244
  %v1017 = vunpack.c.l.b16 %v245
  %v1018 = vunpack.c.l.b16 %v246
  %v1019 = vunpack.c.h.b16 %v246
  %v1020 = vunpack.c.l.b16 %v247
  %v1021 = vunpack.c.l.b16 %v248
  %v1022 = vunpack.c.h.b16 %v248
  %v1023 = vunpack.c.l.b16 %v249
  %v1024 = vunpack.c.l.b16 %v250
  %v1025 = vunpack.c.h.b16 %v250
  %v1026 = vunpack.c.l.b16 %v251
  %v1027 = vunpack.c.l.b16 %v252
  %v1028 = vunpack.c.h.b16 %v252
  %v1029 = vunpack.c.l.b16 %v253
  %v1030 = vunpack.c.l.b16 %v254
  %v1031 = vunpack.c.h.b16 %v254
  %v1032 = vunpack.c.l.b16 %v255
  %v1033 = vunpack.c.l.b16 %v256
  %v1034 = vunpack.c.h.b16 %v256
  %v1035 = vunpack.c.l.b16 %v257
  %v1036 = vunpack.c.l.b16 %v258
  %v1037 = vunpack.c.h.b16 %v258
  %v1038 = vunpack.c.l.b16 %v259
  %v1039 = vunpack.c.l.b16 %v260
  %v1040 = vunpack.c.h.b16 %v260
  %v1041 = vunpack.c.l.b16 %v261
  %v1042 = vunpack.c.l.b16 %v262
  %v1043 = vunpack.c.h.b16 %v262
  %v1044 = vunpack.c.l.b16 %v263
  %v1045 = vunpack.c.l.b16 %v264
  %v1046 = vunpack.c.h.b16 %v264
  %v1047 = vunpack.c.l.b16 %v265
  %v1048 = vunpack.c.l.b16 %v266
  %v1049 = vunpack.c.h.b16 %v266
  %v1050 = vunpack.c.l.b16 %v267
  %v1051 = vunpack.c.l.b16 %v268
  %v1052 = vunpack.c.h.b16 %v268
  %v1053 = vunpack.c.l.b16 %v269
  %v1054 = vunpack.c.l.b16 %v270
  %v1055 = vunpack.c.h.b16 %v270
  %v1056 = vunpack.c.l.b16 %v271
  %v1057 = vunpack.c.l.b16 %v272
  %v1058 = vunpack.c.h.b16 %v272
  %v1059 = vunpack.c.l.b16 %v273
  %v1060 = vunpack.c.l.b16 %v274
  %v1061 = vunpack.c.h.b16 %v274
  %v1062 = vunpack.c.l.b16 %v275
  %v1063 = vunpack.c.l.b16 %v276
  %v1064 = vunpack.c.h.b16 %v276
  %v1065 = vunpack.c.l.b16 %v277
  %v1066 = vunpack.c.l.b16 %v278
  %v1067 = vunpack.c.h.b16 %v278
  %v1068 = vunpack.c.l.b16 %v279
  %v1069 = vunpack.c.l.b16 %v280
  %v1070 = vunpack.c.h.b16 %v280
  %v1071 = vunpack.c.l.b16 %v281
  %v1072 = vunpack.c.l.b16 %v282
  %v1073 = vunpack.c.h.b16 %v282
  %v1074 = vunpack.c.l.b16 %v283
  %v1075 = vunpack.c.l.b16 %v284
  %v1076 = vunpack.c.h.b16 %v284
  %v1077 = vunpack.c.l.b16 %v285
  %v1078 = vunpack.c.l.b16 %v286
  %v1079 = vunpack.c.h.b16 %v286
  %v1080 = vunpack.c.l.b16 %v287
  %v1081 = vunpack.c.l.b16 %v288
  %v1082 = vunpack.c.h.b16 %v288
  %v1083 = vunpack.c.l.b16 %v289
  %v1084 = vunpack.c.l.b16 %v290
  %v1085 = vunpack.c.h.b16 %v290
  %v1086 = vunpack.c.l.b16 %v291
  %v1087 = vunpack.c.l.b16 %v292
  %v1088 = vunpack.c.h.b16 %v292
  %v1089 = vunpack.c.l.b16 %v293
  %v1090 = vunpack.c.l.b16 %v294
  %v1091 = vunpack.c.h.b16 %v294
  %v1092 = vunpack.c.l.b16 %v295
  %v1093 = vunpack.c.l.b16 %v296
  %v1094 = vunpack.c.h.b16 %v296
  %v1095 = vunpack.c.l.b16 %v297
  %v1096 = vunpack.c.l.b16 %v298
  %v1097 = vunpack.c.h.b16 %v298
  %v1098 = vunpack.c.l.b16 %v299
  %v1099 = vunpack.c.l.b16 %v300
  %v1100 = vunpack.c.h.b16 %v300
  %v1101 = vunpack.c.l.b16 %v301
  %v1102 = vunpack.c.l.b16 %v302
  %v1103 = vunpack.c.h.b16 %v302
  %v1104 = vunpack.c.l.b16 %v303
  %v1105 = vunpack.c.l.b16 %v304
  %v1106 = vunpack.c.h.b16 %v304
  %v1107 = vunpack.c.l.b16 %v305
  %v1108 = vunpack.c.l.b16 %v306
  %v1109 = vunpack.c.h.b16 %v306
  %v1110 = vunpack.c.l.b16 %v307
  %v1111 = vunpack.c.l.b16 %v308
  %v1112 = vunpack.c.h.b16 %v308
  %v1113 = vunpack.c.l.b16 %v309
  %v1114 = vunpack.c.l.b16 %v310
  %v1115 = vunpack.c.h.b16 %v310
  %v1116 = vunpack.c.l.b16 %v311
  %v1117 = vunpack.c.l.b16 %v312
  %v1118 = vunpack.c.h.b16 %v312
  %v1119 = vunpack.c.l.b16 %v313
  %v1120 = vunpack.c.l.b16 %v314
  %v1121 = vunpack.c.h.b16 %v314
  %v1122 = vunpack.c.l.b16 %v315
  %v1123 = vunpack.c.l.b16 %v316
  %v1124 = vunpack.c.h.b16 %v316
  %v1125 = vunpack.c.l.b16 %v317
  %v1126 = vunpack.c.l.b16 %v318
  %v1127 = vunpack.c.h.b16 %v318
  %v1128 = vunpack.c.l.b16 %v319
  %v1129 = vunpack.c.l.b16 %v320
  %v1130 = vunpack.c.h.b16 %v320
  %v1131 = vunpack.c.l.b16 %v321
  %v1132 = vunpack.c.l.b16 %v322
  %v1133 = vunpack.c.h.b16 %v322
  %v1134 = vunpack.c.l.b16 %v323
  %v1135 = vunpack.c.l.b16 %v324
  %v1136 = vunpack.c.h.b16 %v324
  %v1137 = vunpack.c.l.b16 %v325
  %v1138 = vpack.c.b16 %v709, %v706
  %v1139 = vpack.c.b16 %v710, %v707
  %v1140 = vpack.c.b16 %v711, %v708
  %v1141 = vpack.c.b16 %v715, %v712
  %v1142 = vpack.c.b16 %v716, %v713
  %v1143 = vpack.c.b16 %v717, %v714
  %v1144 = vpack.c.b16 %v721, %v718
  %v1145 = vpack.c.b16 %v722, %v719
  %v1146 = vpack.c.b16 %v723, %v720
  %v1147 = vpack.c.b16 %v727, %v724
  %v1148 = vpack.c.b16 %v728, %v725
  %v1149 = vpack.c.b16 %v729, %v726
  %v1150 = vpack.c.b16 %v733, %v730
  %v1151 = vpack.c.b16 %v734, %v731
  %v1152 = vpack.c.b16 %v735, %v732
  %v1153 = vpack.c.b16 %v739, %v736
  %v1154 = vpack.c.b16 %v740, %v737
  %v1155 = vpack.c.b16 %v741, %v738
  %v1156 = vpack.c.b16 %v745, %v742
  %v1157 = vpack.c.b16 %v746, %v743
  %v1158 = vpack.c.b16 %v747, %v744
  %v1159 = vpack.c.b16 %v751, %v748
  %v1160 = vpack.c.b16 %v752, %v749
  %v1161 = vpack.c.b16 %v753, %v750
  %v1162 = vpack.c.b16 %v757, %v754
  %v1163 = vpack.c.b16 %v758, %v755
  %v1164 = vpack.c.b16 %v759, %v756
  %v1165 = vpack.c.b16 %v763, %v760
  %v1166 = vpack.c.b16 %v764, %v761
  %v1167 = vpack.c.b16 %v765, %v762
  %v1168 = vpack.c.b16 %v769, %v766
  %v1169 = vpack.c.b16 %v770, %v767
  %v1170 = vpack.c.b16 %v771, %v768
  %v1171 = vpack.c.b16 %v775, %v772
  %v1172 = vpack.c.b16 %v776, %v773
  %v1173 = vpack.c.b16 %v777, %v774
  %v1174 = vpack.c.b16 %v781, %v778
  %v1175 = vpack.c.b16 %v782, %v779
  %v1176 = vpack.c.b16 %v783, %v780
  %v1177 = vpack.c.b16 %v787, %v784
  %v1178 = vpack.c.b16 %v788, %v785
  %v1179 = vpack.c.b16 %v789, %v786
  %v1180 = vpack.c.b16 %v793, %v790
  %v1181 = vpack.c.b16 %v794, %v791
  %v1182 = vpack.c.b16 %v795, %v792
  %v1183 = vpack.c.b16 %v799, %v796
  %v1184 = vpack.c.b16 %v800, %v797
  %v1185 = vpack.c.b16 %v801, %v798
  %v1186 = vpack.c.b16 %v805, %v802
  %v1187 = vpack.c.b16 %v806, %v803
  %v1188 = vpack.c.b16 %v807, %v804
  %v1189 = vpack.c.b16 %v811, %v808
  %v1190 = vpack.c.b16 %v812, %v809
  %v1191 = vpack.c.b16 %v813, %v810
  %v1192 = vpack.c.b16 %v817, %v814
  %v1193 = vpack.c.b16 %v818, %v815
  %v1194 = vpack.c.b16 %v819, %v816
  %v1195 = vpack.c.b16 %v823, %v820
  %v1196 = vpack.c.b16 %v824, %v821
  %v1197 = vpack.c.b16 %v825, %v822
  %v1198 = vpack.c.b16 %v829, %v826
  %v1199 = vpack.c.b16 %v830, %v827
  %v1200 = vpack.c.b16 %v831, %v828
  %v1201 = vpack.c.b16 %v835, %v832
  %v1202 = vpack.c.b16 %v836, %v833
  %v1203 = vpack.c.b16 %v837, %v834
  %v1204 = vpack.c.b16 %v841, %v838
  %v1205 = vpack.c.b16 %v842, %v839
  %v1206 = vpack.c.b16 %v843, %v840
  %v1207 = vpack.c.b16 %v847, %v844
  %v1208 = vpack.c.b16 %v848, %v845
  %v1209 = vpack.c.b16 %v849, %v846
  %v1210 = vpack.c.b16 %v853, %v850
  %v1211 = vpack.c.b16 %v854, %v851
  %v1212 = vpack.c.b16 %v855, %v852
  %v1213 = vpack.c.b16 %v859, %v856
  %v1214 = vpack.c.b16 %v860, %v857
  %v1215 = vpack.c.b16 %v861, %v858
  %v1216 = vpack.c.b16 %v865, %v862
  %v1217 = vpack.c.b16 %v866, %v863
  %v1218 = vpack.c.b16 %v867, %v864
  %v1219 = vpack.c.b16 %v871, %v868
  %v1220 = vpack.c.b16 %v872, %v869
  %v1221 = vpack.c.b16 %v873, %v870
  %v1222 = vpack.c.b16 %v877, %v874
  %v1223 = vpack.c.b16 %v878, %v875
  %v1224 = vpack.c.b16 %v879, %v876
  %v1225 = vpack.c.b16 %v883, %v880
  %v1226 = vpack.c.b16 %v884, %v881
  %v1227 = vpack.c.b16 %v885, %v882
  %v1228 = vpack.c.b16 %v889, %v886
  %v1229 = vpack.c.b16 %v890, %v887
  %v1230 = vpack.c.b16 %v891, %v888
  %v1231 = vpack.c.b16 %v895, %v892
  %v1232 = vpack.c.b16 %v896, %v893
  %v1233 = vpack.c.b16 %v897, %v894
  %v1234 = vpack.c.b16 %v901, %v898
  %v1235 = vpack.c.b16 %v902, %v899
  %v1236 = vpack.c.b16 %v903, %v900
  %v1237 = vpack.c.b16 %v907, %v904
  %v1238 = vpack.c.b16 %v908, %v905
  %v1239 = vpack.c.b16 %v909, %v906
  %v1240 = vpack.c.b16 %v913, %v910
  %v1241 = vpack.c.b16 %v914, %v911
  %v1242 = vpack.c.b16 %v915, %v912
  %v1243 = vpack.c.b16 %v919, %v916
  %v1244 = vpack.c.b16 %v920, %v917
  %v1245 = vpack.c.b16 %v921, %v918
  %v1246 = vpack.c.b16 %v925, %v922
  %v1247 = vpack.c.b16 %v926, %v923
  %v1248 = vpack.c.b16 %v927, %v924
  %v1249 = vpack.c.b16 %v931, %v928
  %v1250 = vpack.c.b16 %v932, %v929
  %v1251 = vpack.c.b16 %v933, %v930
  %v1252 = vpack.c.b16 %v937, %v934
  %v1253 = vpack.c.b16 %v938, %v935
  %v1254 = vpack.c.b16 %v939, %v936
  %v1255 = vpack.c.b16 %v943, %v940
  %v1256 = vpack.c.b16 %v944, %v941
  %v1257 = vpack.c.b16 %v945, %v942
  %v1258 = vpack.c.b16 %v949, %v946
  %v1259 = vpack.c.b16 %v950, %v947
  %v1260 = vpack.c.b16 %v951, %v948
  %v1261 = vpack.c.b16 %v955, %v952
  %v1262 = vpack.c.b16 %v956, %v953
  %v1263 = vpack.c.b16 %v957, %v954
  %v1264 = vpack.c.b16 %v961, %v958
  %v1265 = vpack.c.b16 %v962, %v959
  %v1266 = vpack.c.b16 %v963, %v960
  %v1267 = vpack.c.b16 %v967, %v964
  %v1268 = vpack.c.b16 %v968, %v965
  %v1269 = vpack.c.b16 %v969, %v966
  %v1270 = vpack.c.b16 %v973, %v970
  %v1271 = vpack.c.b16 %v974, %v971
  %v1272 = vpack.c.b16 %v975, %v972
  %v1273 = vpack.c.b16 %v979, %v976
  %v1274 = vpack.c.b16 %v980, %v977
  %v1275 = vpack.c.b16 %v981, %v978
  %v1276 = vpack.c.b16 %v985, %v982
  %v1277 = vpack.c.b16 %v986, %v983
  %v1278 = vpack.c.b16 %v987, %v984
  %v1279 = vpack.c.b16 %v991, %v988
  %v1280 = vpack.c.b16 %v992, %v989
  %v1281 = vpack.c.b16 %v993, %v990
  %v1282 = vpack.c.b16 %v997, %v994
  %v1283 = vpack.c.b16 %v998, %v995
  %v1284 = vpack.c.b16 %v999, %v996
  %v1285 = vpack.c.b16 %v1003, %v1000
  %v1286 = vpack.c.b16 %v1004, %v1001
  %v1287 = vpack.c.b16 %v1005, %v1002
  %v1288 = vpack.c.b16 %v1009, %v1006
  %v1289 = vpack.c.b16 %v1010, %v1007
  %v1290 = vpack.c.b16 %v1011, %v1008
  %v1291 = vpack.c.b16 %v1015, %v1012
  %v1292 = vpack.c.b16 %v1016, %v1013
  %v1293 = vpack.c.b16 %v1017, %v1014
  %v1294 = vpack.c.b16 %v1021, %v1018
  %v1295 = vpack.c.b16 %v1022, %v1019
  %v1296 = vpack.c.b16 %v1023, %v1020
  %v1297 = vpack.c.b16 %v1027, %v1024
  %v1298 = vpack.c.b16 %v1028, %v1025
  %v1299 = vpack.c.b16 %v1029, %v1026
  %v1300 = vpack.c.b16 %v1033, %v1030
  %v1301 = vpack.c.b16 %v1034, %v1031
  %v1302 = vpack.c.b16 %v1035, %v1032
  %v1303 = vpack.c.b16 %v1039, %v1036
  %v1304 = vpack.c.b16 %v1040, %v1037
  %v1305 = vpack.c.b16 %v1041, %v1038
  %v1306 = vpack.c.b16 %v1045, %v1042
  %v1307 = vpack.c.b16 %v1046, %v1043
  %v1308 = vpack.c.b16 %v1047, %v1044
  %v1309 = vpack.c.b16 %v1051, %v1048
  %v1310 = vpack.c.b16 %v1052, %v1049
  %v1311 = vpack.c.b16 %v1053, %v1050
  %v1312 = vpack.c.b16 %v1057, %v1054
  %v1313 = vpack.c.b16 %v1058, %v1055
  %v1314 = vpack.c.b16 %v1059, %v1056
  %v1315 = vpack.c.b16 %v1063, %v1060
  %v1316 = vpack.c.b16 %v1064, %v1061
  %v1317 = vpack.c.b16 %v1065, %v1062
  %v1318 = vpack.c.b16 %v1069, %v1066
  %v1319 = vpack.c.b16 %v1070, %v1067
  %v1320 = vpack.c.b16 %v1071, %v1068
  %v1321 = vpack.c.b16 %v1075, %v1072
  %v1322 = vpack.c.b16 %v1076, %v1073
  %v1323 = vpack.c.b16 %v1077, %v1074
  %v1324 = vpack.c.b16 %v1081, %v1078
  %v1325 = vpack.c.b16 %v1082, %v1079
  %v1326 = vpack.c.b16 %v1083, %v1080
  %v1327 = vpack.c.b16 %v1087, %v1084
  %v1328 = vpack.c.b16 %v1088, %v1085
  %v1329 = vpack.c.b16 %v1089, %v1086
  %v1330 = vpack.c.b16 %v1093, %v1090
  %v1331 = vpack.c.b16 %v1094, %v1091
  %v1332 = vpack.c.b16 %v1095, %v1092
  %v1333 = vpack.c.b16 %v1099, %v1096
  %v1334 = vpack.c.b16 %v1100, %v1097
  %v1335 = vpack.c.b16 %v1101, %v1098
  %v1336 = vpack.c.b16 %v1105, %v1102
  %v1337 = vpack.c.b16 %v1106, %v1103
  %v1338 = vpack.c.b16 %v1107, %v1104
  %v1339 = vpack.c.b16 %v1111, %v1108
  %v1340 = vpack.c.b16 %v1112, %v1109
  %v1341 = vpack.c.b16 %v1113, %v1110
  %v1342 = vpack.c.b16 %v1117, %v1114
  %v1343 = vpack.c.b16 %v1118, %v1115
  %v1344 = vpack.c.b16 %v1119, %v1116
  %v1345 = vpack.c.b16 %v1123, %v1120
  %v1346 = vpack.c.b16 %v1124, %v1121
  %v1347 = vpack.c.b16 %v1125, %v1122
  %v1348 = vpack.c.b16 %v1129, %v1126
  %v1349 = vpack.c.b16 %v1130, %v1127
  %v1350 = vpack.c.b16 %v1131, %v1128
  %v1351 = vpack.c.b16 %v1135, %v1132
  %v1352 = vpack.c.b16 %v1136, %v1133
  %v1353 = vpack.c.b16 %v1137, %v1134
  %1570 = vmatprep.subr.bf16.mxu0 %v1139
  %1571 = vmatpush1.bf16.msra.mxu0 %v1138
  %1572 = vmatprep.subr.bf16.mxu0 %v1142
  %1573 = vmatpush1.bf16.msra.mxu0 %v1141
  %1574 = vmatprep.subr.bf16.mxu0 %v1145
  %1575 = vmatpush1.bf16.msra.mxu0 %v1144
  %1576 = vmatprep.subr.bf16.mxu0 %v1148
  %1577 = vmatpush1.bf16.msra.mxu0 %v1147
  %1578 = vmatprep.subr.bf16.mxu0 %v1151
  %1579 = vmatpush1.bf16.msra.mxu0 %v1150
  %1580 = vmatprep.subr.bf16.mxu0 %v1154
  %1581 = vmatpush1.bf16.msra.mxu0 %v1153
  %1582 = vmatprep.subr.bf16.mxu0 %v1157
  %1583 = vmatpush1.bf16.msra.mxu0 %v1156
  %1584 = vmatprep.subr.bf16.mxu0 %v1160
  %1585 = vmatpush1.bf16.msra.mxu0 %v1159
  %1586 = vmatprep.subr.bf16.mxu0 %v1163
  %1587 = vmatpush1.bf16.msra.mxu0 %v1162
  %1588 = vmatprep.subr.bf16.mxu0 %v1166
  %1589 = vmatpush1.bf16.msra.mxu0 %v1165
  %1590 = vmatprep.subr.bf16.mxu0 %v1169
  %1591 = vmatpush1.bf16.msra.mxu0 %v1168
  %1592 = vmatprep.subr.bf16.mxu0 %v1172
  %1593 = vmatpush1.bf16.msra.mxu0 %v1171
  %1594 = vmatprep.subr.bf16.mxu0 %v1175
  %1595 = vmatpush1.bf16.msra.mxu0 %v1174
  %1596 = vmatprep.subr.bf16.mxu0 %v1178
  %1597 = vmatpush1.bf16.msra.mxu0 %v1177
  %1598 = vmatprep.subr.bf16.mxu0 %v1181
  %1599 = vmatpush1.bf16.msra.mxu0 %v1180
  %1600 = vmatprep.subr.bf16.mxu0 %v1184
  %1601 = vmatpush1.bf16.msra.mxu0 %v1183
  %1602 = vmatprep.mubr.bf16.mxu0 %v383
  %1603 = vmatmul.mubr.bf16.gmra.mrb[0].mxu0 %v382
  %v1604 = vpop.f32.mrb[0].mxu0
  %v1605 = vadd.f32 0.0, %v1604
  %v1606 = vpop.f32.mrb[0].mxu0
  %v1607 = vadd.f32 0.0, %v1606
  %v1608 = vpop.f32.mrb[0].mxu0
  %v1609 = vadd.f32 0.0, %v1608
  %v1610 = vpop.f32.mrb[0].mxu0
  %v1611 = vadd.f32 0.0, %v1610
  %1612 = vmatprep.mubr.bf16.mxu0 %v392
  %1613 = vmatmul.mubr.bf16.gmra.mrb[0].mxu0 %v391
  %v1614 = vpop.f32.mrb[0].mxu0
  %v1615 = vadd.f32 0.0, %v1614
  %v1616 = vpop.f32.mrb[0].mxu0
  %v1617 = vadd.f32 0.0, %v1616
  %v1618 = vpop.f32.mrb[0].mxu0
  %v1619 = vadd.f32 0.0, %v1618
  %v1620 = vpop.f32.mrb[0].mxu0
  %v1621 = vadd.f32 0.0, %v1620
  %1622 = vdwg.mxu0
  %1623 = vmatprep.subr.bf16.mxu0 %v1187
  %1624 = vmatpush1.bf16.msra.mxu0 %v1186
  %1625 = vmatprep.subr.bf16.mxu0 %v1190
  %1626 = vmatpush1.bf16.msra.mxu0 %v1189
  %1627 = vmatprep.subr.bf16.mxu0 %v1193
  %1628 = vmatpush1.bf16.msra.mxu0 %v1192
  %1629 = vmatprep.subr.bf16.mxu0 %v1196
  %1630 = vmatpush1.bf16.msra.mxu0 %v1195
  %1631 = vmatprep.subr.bf16.mxu0 %v1199
  %1632 = vmatpush1.bf16.msra.mxu0 %v1198
  %1633 = vmatprep.subr.bf16.mxu0 %v1202
  %1634 = vmatpush1.bf16.msra.mxu0 %v1201
  %1635 = vmatprep.subr.bf16.mxu0 %v1205
  %1636 = vmatpush1.bf16.msra.mxu0 %v1204
  %1637 = vmatprep.subr.bf16.mxu0 %v1208
  %1638 = vmatpush1.bf16.msra.mxu0 %v1207
  %1639 = vmatprep.subr.bf16.mxu0 %v1211
  %1640 = vmatpush1.bf16.msra.mxu0 %v1210
  %1641 = vmatprep.subr.bf16.mxu0 %v1214
  %1642 = vmatpush1.bf16.msra.mxu0 %v1213
  %1643 = vmatprep.subr.bf16.mxu0 %v1217
  %1644 = vmatpush1.bf16.msra.mxu0 %v1216
  %1645 = vmatprep.subr.bf16.mxu0 %v1220
  %1646 = vmatpush1.bf16.msra.mxu0 %v1219
  %1647 = vmatprep.subr.bf16.mxu0 %v1223
  %1648 = vmatpush1.bf16.msra.mxu0 %v1222
  %1649 = vmatprep.subr.bf16.mxu0 %v1226
  %1650 = vmatpush1.bf16.msra.mxu0 %v1225
  %1651 = vmatprep.subr.bf16.mxu0 %v1229
  %1652 = vmatpush1.bf16.msra.mxu0 %v1228
  %1653 = vmatprep.subr.bf16.mxu0 %v1232
  %1654 = vmatpush1.bf16.msra.mxu0 %v1231
  %1655 = vmatprep.mubr.bf16.mxu0 %v385
  %1656 = vmatmul.mubr.bf16.gmra.mrb[0].mxu0 %v384
  %v1657 = vpop.f32.mrb[0].mxu0
  %v1658 = vadd.f32 %v1605, %v1657
  %v1659 = vpop.f32.mrb[0].mxu0
  %v1660 = vadd.f32 %v1607, %v1659
  %v1661 = vpop.f32.mrb[0].mxu0
  %v1662 = vadd.f32 %v1609, %v1661
  %v1663 = vpop.f32.mrb[0].mxu0
  %v1664 = vadd.f32 %v1611, %v1663
  %1665 = vmatprep.mubr.bf16.mxu0 %v394
  %1666 = vmatmul.mubr.bf16.gmra.mrb[0].mxu0 %v393
  %v1667 = vpop.f32.mrb[0].mxu0
  %v1668 = vadd.f32 %v1615, %v1667
  %v1669 = vpop.f32.mrb[0].mxu0
  %v1670 = vadd.f32 %v1617, %v1669
  %v1671 = vpop.f32.mrb[0].mxu0
  %v1672 = vadd.f32 %v1619, %v1671
  %v1673 = vpop.f32.mrb[0].mxu0
  %v1674 = vadd.f32 %v1621, %v1673
  %1675 = vdwg.mxu0
  %1676 = vmatprep.subr.bf16.mxu0 %v1235
  %1677 = vmatpush1.bf16.msra.mxu0 %v1234
  %1678 = vmatprep.subr.bf16.mxu0 %v1238
  %1679 = vmatpush1.bf16.msra.mxu0 %v1237
  %1680 = vmatprep.subr.bf16.mxu0 %v1241
  %1681 = vmatpush1.bf16.msra.mxu0 %v1240
  %1682 = vmatprep.subr.bf16.mxu0 %v1244
  %1683 = vmatpush1.bf16.msra.mxu0 %v1243
  %1684 = vmatprep.subr.bf16.mxu0 %v1247
  %1685 = vmatpush1.bf16.msra.mxu0 %v1246
  %1686 = vmatprep.subr.bf16.mxu0 %v1250
  %1687 = vmatpush1.bf16.msra.mxu0 %v1249
  %1688 = vmatprep.subr.bf16.mxu0 %v1253
  %1689 = vmatpush1.bf16.msra.mxu0 %v1252
  %1690 = vmatprep.subr.bf16.mxu0 %v1256
  %1691 = vmatpush1.bf16.msra.mxu0 %v1255
  %1692 = vmatprep.subr.bf16.mxu0 %v1259
  %1693 = vmatpush1.bf16.msra.mxu0 %v1258
  %1694 = vmatprep.subr.bf16.mxu0 %v1262
  %1695 = vmatpush1.bf16.msra.mxu0 %v1261
  %1696 = vmatprep.subr.bf16.mxu0 %v1265
  %1697 = vmatpush1.bf16.msra.mxu0 %v1264
  %1698 = vmatprep.subr.bf16.mxu0 %v1268
  %1699 = vmatpush1.bf16.msra.mxu0 %v1267
  %1700 = vmatprep.subr.bf16.mxu0 %v1271
  %1701 = vmatpush1.bf16.msra.mxu0 %v1270
  %1702 = vmatprep.subr.bf16.mxu0 %v1274
  %1703 = vmatpush1.bf16.msra.mxu0 %v1273
  %1704 = vmatprep.subr.bf16.mxu0 %v1277
  %1705 = vmatpush1.bf16.msra.mxu0 %v1276
  %1706 = vmatprep.subr.bf16.mxu0 %v1280
  %1707 = vmatpush1.bf16.msra.mxu0 %v1279
  %1708 = vmatprep.mubr.bf16.mxu0 %v387
  %1709 = vmatmul.mubr.bf16.gmra.mrb[0].mxu0 %v386
  %v1710 = vpop.f32.mrb[0].mxu0
  %v1711 = vadd.f32 %v1658, %v1710
  %v1712 = vpop.f32.mrb[0].mxu0
  %v1713 = vadd.f32 %v1660, %v1712
  %v1714 = vpop.f32.mrb[0].mxu0
  %v1715 = vadd.f32 %v1662, %v1714
  %v1716 = vpop.f32.mrb[0].mxu0
  %v1717 = vadd.f32 %v1664, %v1716
  %1718 = vmatprep.mubr.bf16.mxu0 %v396
  %1719 = vmatmul.mubr.bf16.gmra.mrb[0].mxu0 %v395
  %v1720 = vpop.f32.mrb[0].mxu0
  %v1721 = vadd.f32 %v1668, %v1720
  %v1722 = vpop.f32.mrb[0].mxu0
  %v1723 = vadd.f32 %v1670, %v1722
  %v1724 = vpop.f32.mrb[0].mxu0
  %v1725 = vadd.f32 %v1672, %v1724
  %v1726 = vpop.f32.mrb[0].mxu0
  %v1727 = vadd.f32 %v1674, %v1726
  %1728 = vdwg.mxu0
  %1729 = vmatprep.subr.bf16.mxu0 %v1283
  %1730 = vmatpush1.bf16.msra.mxu0 %v1282
  %1731 = vmatprep.subr.bf16.mxu0 %v1286
  %1732 = vmatpush1.bf16.msra.mxu0 %v1285
  %1733 = vmatprep.subr.bf16.mxu0 %v1289
  %1734 = vmatpush1.bf16.msra.mxu0 %v1288
  %1735 = vmatprep.subr.bf16.mxu0 %v1292
  %1736 = vmatpush1.bf16.msra.mxu0 %v1291
  %1737 = vmatprep.subr.bf16.mxu0 %v1295
  %1738 = vmatpush1.bf16.msra.mxu0 %v1294
  %1739 = vmatprep.subr.bf16.mxu0 %v1298
  %1740 = vmatpush1.bf16.msra.mxu0 %v1297
  %1741 = vmatprep.subr.bf16.mxu0 %v1301
  %1742 = vmatpush1.bf16.msra.mxu0 %v1300
  %1743 = vmatprep.subr.bf16.mxu0 %v1304
  %1744 = vmatpush1.bf16.msra.mxu0 %v1303
  %1745 = vmatprep.subr.bf16.mxu0 %v1307
  %1746 = vmatpush1.bf16.msra.mxu0 %v1306
  %1747 = vmatprep.subr.bf16.mxu0 %v1310
  %1748 = vmatpush1.bf16.msra.mxu0 %v1309
  %1749 = vmatprep.subr.bf16.mxu0 %v1313
  %1750 = vmatpush1.bf16.msra.mxu0 %v1312
  %1751 = vmatprep.subr.bf16.mxu0 %v1316
  %1752 = vmatpush1.bf16.msra.mxu0 %v1315
  %1753 = vmatprep.subr.bf16.mxu0 %v1319
  %1754 = vmatpush1.bf16.msra.mxu0 %v1318
  %1755 = vmatprep.subr.bf16.mxu0 %v1322
  %1756 = vmatpush1.bf16.msra.mxu0 %v1321
  %1757 = vmatprep.subr.bf16.mxu0 %v1325
  %1758 = vmatpush1.bf16.msra.mxu0 %v1324
  %1759 = vmatprep.subr.bf16.mxu0 %v1328
  %1760 = vmatpush1.bf16.msra.mxu0 %v1327
  %1761 = vmatprep.mubr.bf16.mxu0 %v389
  %1762 = vmatmul.mubr.bf16.gmra.mrb[0].mxu0 %v388
  %v1763 = vpop.f32.mrb[0].mxu0
  %v1764 = vadd.f32 %v1711, %v1763
  %v1765 = vpop.f32.mrb[0].mxu0
  %v1766 = vadd.f32 %v1713, %v1765
  %v1767 = vpop.f32.mrb[0].mxu0
  %v1768 = vadd.f32 %v1715, %v1767
  %v1769 = vpop.f32.mrb[0].mxu0
  %v1770 = vadd.f32 %v1717, %v1769
  %1771 = vmatprep.mubr.bf16.mxu0 %v398
  %1772 = vmatmul.mubr.bf16.gmra.mrb[0].mxu0 %v397
  %v1773 = vpop.f32.mrb[0].mxu0
  %v1774 = vadd.f32 %v1721, %v1773
  %v1775 = vpop.f32.mrb[0].mxu0
  %v1776 = vadd.f32 %v1723, %v1775
  %v1777 = vpop.f32.mrb[0].mxu0
  %v1778 = vadd.f32 %v1725, %v1777
  %v1779 = vpop.f32.mrb[0].mxu0
  %v1780 = vadd.f32 %v1727, %v1779
  %1781 = vdwg.mxu0
  %1782 = vmatprep.subr.bf16.mxu0 %v1331
  %1783 = vmatpush1.bf16.msra.mxu0 %v1330
  %1784 = vmatprep.subr.bf16.mxu0 %v1334
  %1785 = vmatpush1.bf16.msra.mxu0 %v1333
  %1786 = vmatprep.subr.bf16.mxu0 %v1337
  %1787 = vmatpush1.bf16.msra.mxu0 %v1336
  %1788 = vmatprep.subr.bf16.mxu0 %v1340
  %1789 = vmatpush1.bf16.msra.mxu0 %v1339
  %1790 = vmatprep.subr.bf16.mxu0 %v1343
  %1791 = vmatpush1.bf16.msra.mxu0 %v1342
  %1792 = vmatprep.subr.bf16.mxu0 %v1346
  %1793 = vmatpush1.bf16.msra.mxu0 %v1345
  %1794 = vmatprep.subr.bf16.mxu0 %v1349
  %1795 = vmatpush1.bf16.msra.mxu0 %v1348
  %1796 = vmatprep.subr.bf16.mxu0 %v1352
  %1797 = vmatpush1.bf16.msra.mxu0 %v1351
  %1798 = vmatprep.subr.bf16.mxu0 0
  %1799 = vmatpush1.bf16.msra.mxu0 0
  %1800 = vmatprep.subr.bf16.mxu0 0
  %1801 = vmatpush1.bf16.msra.mxu0 0
  %1802 = vmatprep.subr.bf16.mxu0 0
  %1803 = vmatpush1.bf16.msra.mxu0 0
  %1804 = vmatprep.subr.bf16.mxu0 0
  %1805 = vmatpush1.bf16.msra.mxu0 0
  %1806 = vmatprep.subr.bf16.mxu0 0
  %1807 = vmatpush1.bf16.msra.mxu0 0
  %1808 = vmatprep.subr.bf16.mxu0 0
  %1809 = vmatpush1.bf16.msra.mxu0 0
  %1810 = vmatprep.subr.bf16.mxu0 0
  %1811 = vmatpush1.bf16.msra.mxu0 0
  %1812 = vmatprep.subr.bf16.mxu0 0
  %1813 = vmatpush1.bf16.msra.mxu0 0
  %1814 = vmatprep.mubr.bf16.mxu0 0
  %1815 = vmatmul.mubr.bf16.gmra.mrb[0].mxu0 %v390
  %v1816 = vpop.f32.mrb[0].mxu0
  %v1817 = vadd.f32 %v1764, %v1816
  %v1818 = vpop.f32.mrb[0].mxu0
  %v1819 = vadd.f32 %v1766, %v1818
  %v1820 = vpop.f32.mrb[0].mxu0
  %v1821 = vadd.f32 %v1768, %v1820
  %v1822 = vpop.f32.mrb[0].mxu0
  %v1823 = vadd.f32 %v1770, %v1822
  %1824 = vmatprep.mubr.bf16.mxu0 0
  %1825 = vmatmul.mubr.bf16.gmra.mrb[0].mxu0 %v399
  %v1826 = vpop.f32.mrb[0].mxu0
  %v1827 = vadd.f32 %v1774, %v1826
  %v1828 = vpop.f32.mrb[0].mxu0
  %v1829 = vadd.f32 %v1776, %v1828
  %v1830 = vpop.f32.mrb[0].mxu0
  %v1831 = vadd.f32 %v1778, %v1830
  %v1832 = vpop.f32.mrb[0].mxu0
  %v1833 = vadd.f32 %v1780, %v1832
  %1834 = vdwg.mxu0
  %1835 = vmatprep.subr.bf16.mxu0 0
  %1836 = vmatpush1.bf16.msra.mxu0 %v1140
  %1837 = vmatprep.subr.bf16.mxu0 0
  %1838 = vmatpush1.bf16.msra.mxu0 %v1143
  %1839 = vmatprep.subr.bf16.mxu0 0
  %1840 = vmatpush1.bf16.msra.mxu0 %v1146
  %1841 = vmatprep.subr.bf16.mxu0 0
  %1842 = vmatpush1.bf16.msra.mxu0 %v1149
  %1843 = vmatprep.subr.bf16.mxu0 0
  %1844 = vmatpush1.bf16.msra.mxu0 %v1152
  %1845 = vmatprep.subr.bf16.mxu0 0
  %1846 = vmatpush1.bf16.msra.mxu0 %v1155
  %1847 = vmatprep.subr.bf16.mxu0 0
  %1848 = vmatpush1.bf16.msra.mxu0 %v1158
  %1849 = vmatprep.subr.bf16.mxu0 0
  %1850 = vmatpush1.bf16.msra.mxu0 %v1161
  %1851 = vmatprep.subr.bf16.mxu0 0
  %1852 = vmatpush1.bf16.msra.mxu0 %v1164
  %1853 = vmatprep.subr.bf16.mxu0 0
  %1854 = vmatpush1.bf16.msra.mxu0 %v1167
  %1855 = vmatprep.subr.bf16.mxu0 0
  %1856 = vmatpush1.bf16.msra.mxu0 %v1170
  %1857 = vmatprep.subr.bf16.mxu0 0
  %1858 = vmatpush1.bf16.msra.mxu0 %v1173
  %1859 = vmatprep.subr.bf16.mxu0 0
  %1860 = vmatpush1.bf16.msra.mxu0 %v1176
  %1861 = vmatprep.subr.bf16.mxu0 0
  %1862 = vmatpush1.bf16.msra.mxu0 %v1179
  %1863 = vmatprep.subr.bf16.mxu0 0
  %1864 = vmatpush1.bf16.msra.mxu0 %v1182
  %1865 = vmatprep.subr.bf16.mxu0 0
  %1866 = vmatpush1.bf16.msra.mxu0 %v1185
  %1867 = vmatprep.mubr.bf16.mxu0 %v383
  %1868 = vmatmul.mubr.bf16.gmra.mrb[0].mxu0 %v382
  %v1869 = vpop.f32.mrb[0].mxu0
  %v1870 = vadd.f32 0.0, %v1869
  %v1871 = vpop.f32.mrb[0].mxu0
  %v1872 = vpop.f32.mrb[0].mxu0
  %v1873 = vadd.f32 0.0, %v1872
  %v1874 = vpop.f32.mrb[0].mxu0
  %1875 = vmatprep.mubr.bf16.mxu0 %v392
  %1876 = vmatmul.mubr.bf16.gmra.mrb[0].mxu0 %v391
  %v1877 = vpop.f32.mrb[0].mxu0
  %v1878 = vadd.f32 0.0, %v1877
  %v1879 = vpop.f32.mrb[0].mxu0
  %v1880 = vpop.f32.mrb[0].mxu0
  %v1881 = vadd.f32 0.0, %v1880
  %v1882 = vpop.f32.mrb[0].mxu0
  %1883 = vdwg.mxu0
  %1884 = vmatprep.subr.bf16.mxu0 0
  %1885 = vmatpush1.bf16.msra.mxu0 %v1188
  %1886 = vmatprep.subr.bf16.mxu0 0
  %1887 = vmatpush1.bf16.msra.mxu0 %v1191
  %1888 = vmatprep.subr.bf16.mxu0 0
  %1889 = vmatpush1.bf16.msra.mxu0 %v1194
  %1890 = vmatprep.subr.bf16.mxu0 0
  %1891 = vmatpush1.bf16.msra.mxu0 %v1197
  %1892 = vmatprep.subr.bf16.mxu0 0
  %1893 = vmatpush1.bf16.msra.mxu0 %v1200
  %1894 = vmatprep.subr.bf16.mxu0 0
  %1895 = vmatpush1.bf16.msra.mxu0 %v1203
  %1896 = vmatprep.subr.bf16.mxu0 0
  %1897 = vmatpush1.bf16.msra.mxu0 %v1206
  %1898 = vmatprep.subr.bf16.mxu0 0
  %1899 = vmatpush1.bf16.msra.mxu0 %v1209
  %1900 = vmatprep.subr.bf16.mxu0 0
  %1901 = vmatpush1.bf16.msra.mxu0 %v1212
  %1902 = vmatprep.subr.bf16.mxu0 0
  %1903 = vmatpush1.bf16.msra.mxu0 %v1215
  %1904 = vmatprep.subr.bf16.mxu0 0
  %1905 = vmatpush1.bf16.msra.mxu0 %v1218
  %1906 = vmatprep.subr.bf16.mxu0 0
  %1907 = vmatpush1.bf16.msra.mxu0 %v1221
  %1908 = vmatprep.subr.bf16.mxu0 0
  %1909 = vmatpush1.bf16.msra.mxu0 %v1224
  %1910 = vmatprep.subr.bf16.mxu0 0
  %1911 = vmatpush1.bf16.msra.mxu0 %v1227
  %1912 = vmatprep.subr.bf16.mxu0 0
  %1913 = vmatpush1.bf16.msra.mxu0 %v1230
  %1914 = vmatprep.subr.bf16.mxu0 0
  %1915 = vmatpush1.bf16.msra.mxu0 %v1233
  %1916 = vmatprep.mubr.bf16.mxu0 %v385
  %1917 = vmatmul.mubr.bf16.gmra.mrb[0].mxu0 %v384
  %v1918 = vpop.f32.mrb[0].mxu0
  %v1919 = vadd.f32 %v1870, %v1918
  %v1920 = vpop.f32.mrb[0].mxu0
  %v1921 = vpop.f32.mrb[0].mxu0
  %v1922 = vadd.f32 %v1873, %v1921
  %v1923 = vpop.f32.mrb[0].mxu0
  %1924 = vmatprep.mubr.bf16.mxu0 %v394
  %1925 = vmatmul.mubr.bf16.gmra.mrb[0].mxu0 %v393
  %v1926 = vpop.f32.mrb[0].mxu0
  %v1927 = vadd.f32 %v1878, %v1926
  %v1928 = vpop.f32.mrb[0].mxu0
  %v1929 = vpop.f32.mrb[0].mxu0
  %v1930 = vadd.f32 %v1881, %v1929
  %v1931 = vpop.f32.mrb[0].mxu0
  %1932 = vdwg.mxu0
  %1933 = vmatprep.subr.bf16.mxu0 0
  %1934 = vmatpush1.bf16.msra.mxu0 %v1236
  %1935 = vmatprep.subr.bf16.mxu0 0
  %1936 = vmatpush1.bf16.msra.mxu0 %v1239
  %1937 = vmatprep.subr.bf16.mxu0 0
  %1938 = vmatpush1.bf16.msra.mxu0 %v1242
  %1939 = vmatprep.subr.bf16.mxu0 0
  %1940 = vmatpush1.bf16.msra.mxu0 %v1245
  %1941 = vmatprep.subr.bf16.mxu0 0
  %1942 = vmatpush1.bf16.msra.mxu0 %v1248
  %1943 = vmatprep.subr.bf16.mxu0 0
  %1944 = vmatpush1.bf16.msra.mxu0 %v1251
  %1945 = vmatprep.subr.bf16.mxu0 0
  %1946 = vmatpush1.bf16.msra.mxu0 %v1254
  %1947 = vmatprep.subr.bf16.mxu0 0
  %1948 = vmatpush1.bf16.msra.mxu0 %v1257
  %1949 = vmatprep.subr.bf16.mxu0 0
  %1950 = vmatpush1.bf16.msra.mxu0 %v1260
  %1951 = vmatprep.subr.bf16.mxu0 0
  %1952 = vmatpush1.bf16.msra.mxu0 %v1263
  %1953 = vmatprep.subr.bf16.mxu0 0
  %1954 = vmatpush1.bf16.msra.mxu0 %v1266
  %1955 = vmatprep.subr.bf16.mxu0 0
  %1956 = vmatpush1.bf16.msra.mxu0 %v1269
  %1957 = vmatprep.subr.bf16.mxu0 0
  %1958 = vmatpush1.bf16.msra.mxu0 %v1272
  %1959 = vmatprep.subr.bf16.mxu0 0
  %1960 = vmatpush1.bf16.msra.mxu0 %v1275
  %1961 = vmatprep.subr.bf16.mxu0 0
  %1962 = vmatpush1.bf16.msra.mxu0 %v1278
  %1963 = vmatprep.subr.bf16.mxu0 0
  %1964 = vmatpush1.bf16.msra.mxu0 %v1281
  %1965 = vmatprep.mubr.bf16.mxu0 %v387
  %1966 = vmatmul.mubr.bf16.gmra.mrb[0].mxu0 %v386
  %v1967 = vpop.f32.mrb[0].mxu0
  %v1968 = vadd.f32 %v1919, %v1967
  %v1969 = vpop.f32.mrb[0].mxu0
  %v1970 = vpop.f32.mrb[0].mxu0
  %v1971 = vadd.f32 %v1922, %v1970
  %v1972 = vpop.f32.mrb[0].mxu0
  %1973 = vmatprep.mubr.bf16.mxu0 %v396
  %1974 = vmatmul.mubr.bf16.gmra.mrb[0].mxu0 %v395
  %v1975 = vpop.f32.mrb[0].mxu0
  %v1976 = vadd.f32 %v1927, %v1975
  %v1977 = vpop.f32.mrb[0].mxu0
  %v1978 = vpop.f32.mrb[0].mxu0
  %v1979 = vadd.f32 %v1930, %v1978
  %v1980 = vpop.f32.mrb[0].mxu0
  %1981 = vdwg.mxu0
  %1982 = vmatprep.subr.bf16.mxu0 0
  %1983 = vmatpush1.bf16.msra.mxu0 %v1284
  %1984 = vmatprep.subr.bf16.mxu0 0
  %1985 = vmatpush1.bf16.msra.mxu0 %v1287
  %1986 = vmatprep.subr.bf16.mxu0 0
  %1987 = vmatpush1.bf16.msra.mxu0 %v1290
  %1988 = vmatprep.subr.bf16.mxu0 0
  %1989 = vmatpush1.bf16.msra.mxu0 %v1293
  %1990 = vmatprep.subr.bf16.mxu0 0
  %1991 = vmatpush1.bf16.msra.mxu0 %v1296
  %1992 = vmatprep.subr.bf16.mxu0 0
  %1993 = vmatpush1.bf16.msra.mxu0 %v1299
  %1994 = vmatprep.subr.bf16.mxu0 0
  %1995 = vmatpush1.bf16.msra.mxu0 %v1302
  %1996 = vmatprep.subr.bf16.mxu0 0
  %1997 = vmatpush1.bf16.msra.mxu0 %v1305
  %1998 = vmatprep.subr.bf16.mxu0 0
  %1999 = vmatpush1.bf16.msra.mxu0 %v1308
  %2000 = vmatprep.subr.bf16.mxu0 0
  %2001 = vmatpush1.bf16.msra.mxu0 %v1311
  %2002 = vmatprep.subr.bf16.mxu0 0
  %2003 = vmatpush1.bf16.msra.mxu0 %v1314
  %2004 = vmatprep.subr.bf16.mxu0 0
  %2005 = vmatpush1.bf16.msra.mxu0 %v1317
  %2006 = vmatprep.subr.bf16.mxu0 0
  %2007 = vmatpush1.bf16.msra.mxu0 %v1320
  %2008 = vmatprep.subr.bf16.mxu0 0
  %2009 = vmatpush1.bf16.msra.mxu0 %v1323
  %2010 = vmatprep.subr.bf16.mxu0 0
  %2011 = vmatpush1.bf16.msra.mxu0 %v1326
  %2012 = vmatprep.subr.bf16.mxu0 0
  %2013 = vmatpush1.bf16.msra.mxu0 %v1329
  %2014 = vmatprep.mubr.bf16.mxu0 %v389
  %2015 = vmatmul.mubr.bf16.gmra.mrb[0].mxu0 %v388
  %v2016 = vpop.f32.mrb[0].mxu0
  %v2017 = vadd.f32 %v1968, %v2016
  %v2018 = vpop.f32.mrb[0].mxu0
  %v2019 = vpop.f32.mrb[0].mxu0
  %v2020 = vadd.f32 %v1971, %v2019
  %v2021 = vpop.f32.mrb[0].mxu0
  %2022 = vmatprep.mubr.bf16.mxu0 %v398
  %2023 = vmatmul.mubr.bf16.gmra.mrb[0].mxu0 %v397
  %v2024 = vpop.f32.mrb[0].mxu0
  %v2025 = vadd.f32 %v1976, %v2024
  %v2026 = vpop.f32.mrb[0].mxu0
  %v2027 = vpop.f32.mrb[0].mxu0
  %v2028 = vadd.f32 %v1979, %v2027
  %v2029 = vpop.f32.mrb[0].mxu0
  %2030 = vdwg.mxu0
  %2031 = vmatprep.subr.bf16.mxu0 0
  %2032 = vmatpush1.bf16.msra.mxu0 %v1332
  %2033 = vmatprep.subr.bf16.mxu0 0
  %2034 = vmatpush1.bf16.msra.mxu0 %v1335
  %2035 = vmatprep.subr.bf16.mxu0 0
  %2036 = vmatpush1.bf16.msra.mxu0 %v1338
  %2037 = vmatprep.subr.bf16.mxu0 0
  %2038 = vmatpush1.bf16.msra.mxu0 %v1341
  %2039 = vmatprep.subr.bf16.mxu0 0
  %2040 = vmatpush1.bf16.msra.mxu0 %v1344
  %2041 = vmatprep.subr.bf16.mxu0 0
  %2042 = vmatpush1.bf16.msra.mxu0 %v1347
  %2043 = vmatprep.subr.bf16.mxu0 0
  %2044 = vmatpush1.bf16.msra.mxu0 %v1350
  %2045 = vmatprep.subr.bf16.mxu0 0
  %2046 = vmatpush1.bf16.msra.mxu0 %v1353
  %2047 = vmatprep.subr.bf16.mxu0 0
  %2048 = vmatpush1.bf16.msra.mxu0 0
  %2049 = vmatprep.subr.bf16.mxu0 0
  %2050 = vmatpush1.bf16.msra.mxu0 0
  %2051 = vmatprep.subr.bf16.mxu0 0
  %2052 = vmatpush1.bf16.msra.mxu0 0
  %2053 = vmatprep.subr.bf16.mxu0 0
  %2054 = vmatpush1.bf16.msra.mxu0 0
  %2055 = vmatprep.subr.bf16.mxu0 0
  %2056 = vmatpush1.bf16.msra.mxu0 0
  %2057 = vmatprep.subr.bf16.mxu0 0
  %2058 = vmatpush1.bf16.msra.mxu0 0
  %2059 = vmatprep.subr.bf16.mxu0 0
  %2060 = vmatpush1.bf16.msra.mxu0 0
  %2061 = vmatprep.subr.bf16.mxu0 0
  %2062 = vmatpush1.bf16.msra.mxu0 0
  %2063 = vmatprep.mubr.bf16.mxu0 0
  %2064 = vmatmul.mubr.bf16.gmra.mrb[0].mxu0 %v390
  %v2065 = vpop.f32.mrb[0].mxu0
  %v2066 = vadd.f32 %v2017, %v2065
  %v2067 = vpop.f32.mrb[0].mxu0
  %v2068 = vpop.f32.mrb[0].mxu0
  %v2069 = vadd.f32 %v2020, %v2068
  %v2070 = vpop.f32.mrb[0].mxu0
  %2071 = vmatprep.mubr.bf16.mxu0 0
  %2072 = vmatmul.mubr.bf16.gmra.mrb[0].mxu0 %v399
  %v2073 = vpop.f32.mrb[0].mxu0
  %v2074 = vadd.f32 %v2025, %v2073
  %v2075 = vpop.f32.mrb[0].mxu0
  %v2076 = vpop.f32.mrb[0].mxu0
  %v2077 = vadd.f32 %v2028, %v2076
  %v2078 = vpop.f32.mrb[0].mxu0
  %2079 = vdwg.mxu0
  %v2080 = vadd.f32 %v1817, %v1821
  %v2081 = vadd.f32 %v2080, %v1827
  %v2082 = vadd.f32 %v2081, %v1831
  %v2083 = vrot.slane %v2082, 4
  %v2084 = vadd.f32 %v2082, %v2083
  %v2085 = vrot.slane %v2084, 2
  %v2086 = vadd.f32 %v2084, %v2085
  %v2087 = vrot.slane %v2086, 1
  %v2088 = vadd.f32 %v2086, %v2087
  %v2089 = vadd.f32 %v1819, %v1823
  %v2090 = vadd.f32 %v2089, %v1829
  %v2091 = vadd.f32 %v2090, %v1833
  %v2092 = vrot.slane %v2091, 4
  %v2093 = vadd.f32 %v2091, %v2092
  %v2094 = vrot.slane %v2093, 2
  %v2095 = vadd.f32 %v2093, %v2094
  %v2096 = vrot.slane %v2095, 1
  %v2097 = vadd.f32 %v2095, %v2096
  %v2098 = vadd.f32 %v2066, %v2069
  %v2099 = vadd.f32 %v2098, %v2074
  %v2100 = vadd.f32 %v2099, %v2077
  %v2101 = vrot.slane %v2100, 4
  %v2102 = vadd.f32 %v2100, %v2101
  %v2103 = vrot.slane %v2102, 2
  %v2104 = vadd.f32 %v2102, %v2103
  %v2105 = vrot.slane %v2104, 1
  %v2106 = vadd.f32 %v2104, %v2105
  %v2107 = vmul.f32 %v1817, %v1817
  %v2108 = vmul.f32 %v1819, %v1819
  %v2109 = vmul.f32 %v2066, %v2066
  %v2110 = vmul.f32 %v1821, %v1821
  %v2111 = vmul.f32 %v1823, %v1823
  %v2112 = vmul.f32 %v2069, %v2069
  %v2113 = vmul.f32 %v1827, %v1827
  %v2114 = vmul.f32 %v1829, %v1829
  %v2115 = vmul.f32 %v2074, %v2074
  %v2116 = vmul.f32 %v1831, %v1831
  %v2117 = vmul.f32 %v1833, %v1833
  %v2118 = vmul.f32 %v2077, %v2077
  %v2119 = vadd.f32 %v2107, %v2110
  %v2120 = vadd.f32 %v2119, %v2113
  %v2121 = vadd.f32 %v2120, %v2116
  %v2122 = vrot.slane %v2121, 4
  %v2123 = vadd.f32 %v2121, %v2122
  %v2124 = vrot.slane %v2123, 2
  %v2125 = vadd.f32 %v2123, %v2124
  %v2126 = vrot.slane %v2125, 1
  %v2127 = vadd.f32 %v2125, %v2126
  %v2128 = vadd.f32 %v2108, %v2111
  %v2129 = vadd.f32 %v2128, %v2114
  %v2130 = vadd.f32 %v2129, %v2117
  %v2131 = vrot.slane %v2130, 4
  %v2132 = vadd.f32 %v2130, %v2131
  %v2133 = vrot.slane %v2132, 2
  %v2134 = vadd.f32 %v2132, %v2133
  %v2135 = vrot.slane %v2134, 1
  %v2136 = vadd.f32 %v2134, %v2135
  %v2137 = vadd.f32 %v2109, %v2112
  %v2138 = vadd.f32 %v2137, %v2115
  %v2139 = vadd.f32 %v2138, %v2118
  %v2140 = vrot.slane %v2139, 4
  %v2141 = vadd.f32 %v2139, %v2140
  %v2142 = vrot.slane %v2141, 2
  %v2143 = vadd.f32 %v2141, %v2142
  %v2144 = vrot.slane %v2143, 1
  %v2145 = vadd.f32 %v2143, %v2144
  %v2146 = vmul.f32 %v2088, 0.04
  %v2147 = vmul.f32 %v2097, 0.04
  %v2148 = vmul.f32 %v2106, 0.04
  %v2149 = vmul.f32 %v2127, 0.04
  %v2150 = vmul.f32 %v2136, 0.04
  %v2151 = vmul.f32 %v2145, 0.04
  %v2152 = vmul.f32 %v2146, %v2146
  %v2153 = vmul.f32 %v2147, %v2147
  %v2154 = vmul.f32 %v2148, %v2148
  %v2155 = vsub.f32 %v2149, %v2152
  %v2156 = vsub.f32 %v2150, %v2153
  %v2157 = vsub.f32 %v2151, %v2154
  %v2158 = vadd.f32 %v2155, 0.001
  %v2159 = vadd.f32 %v2156, 0.001
  %v2160 = vadd.f32 %v2157, 0.001
  %v2161 = vrsqrt.pop %v2158
  %v2162 = vrsqrt.pop %v2159
  %v2163 = vrsqrt.pop %v2160
  %v2164 = vld [vmem:[%s2] sm:$0x7]
  %v2168 = vcombine.low %v2161, %v2162
  %v2170 = vunpack.c.l.s4 1966171168
  %v2171 = vunpack.c.0.s8 %v2170
  %v2172 = vlaneseq
  %v2173 = vshrl.u32 %v2172, 7
  %v2174 = vsub.s32 %v2171, %v2173
  %v2175 = vrot.slane %v2168, %v2174
  %v2177 = vunpack.c.l.s4 1966171168
  %v2178 = vunpack.c.0.s8 %v2177
  %v2179 = vlaneseq
  %v2180 = vshrl.u32 %v2179, 7
  %v2181 = vsub.s32 %v2178, %v2180
  %v2182 = vrot.slane %v2163, %v2181
  %v2183 = vcombine.low %v2175, %v2182
  %v2185 = vunpack.c.l.s4 1966171168
  %v2186 = vunpack.c.0.s8 %v2185
  %v2187 = vlaneseq
  %v2188 = vshrl.u32 %v2187, 7
  %v2189 = vsub.s32 %v2186, %v2188
  %v2190 = vrot.slane %v2183, %v2189
  %v2192 = vmul.f32 %v2164, %v2190
  %v2193 = vld [vmem:[%s3] sm:$0x7]
  %v2195 = vlaneseq
  %v2196 = vshrl.u32 %v2195, 7
  %v2197 = vsub.s32 0, %v2196
  %v2198 = vrot.slane %v2192, %v2197
  %v2199 = vlaneseq
  %v2200 = vshrl.u32 %v2199, 7
  %v2201 = vsub.s32 1, %v2200
  %v2202 = vrot.slane %v2192, %v2201
  %v2203 = vlaneseq
  %v2204 = vshrl.u32 %v2203, 7
  %v2205 = vsub.s32 2, %v2204
  %v2206 = vrot.slane %v2192, %v2205
  %v2210 = vmul.f32 %v2146, %v2198
  %v2211 = vmul.f32 %v2147, %v2202
  %v2212 = vmul.f32 %v2148, %v2206
  %v2216 = vcombine.low %v2210, %v2211
  %v2218 = vunpack.c.l.s4 1966171168
  %v2219 = vunpack.c.0.s8 %v2218
  %v2220 = vlaneseq
  %v2221 = vshrl.u32 %v2220, 7
  %v2222 = vsub.s32 %v2219, %v2221
  %v2223 = vrot.slane %v2216, %v2222
  %v2225 = vunpack.c.l.s4 1966171168
  %v2226 = vunpack.c.0.s8 %v2225
  %v2227 = vlaneseq
  %v2228 = vshrl.u32 %v2227, 7
  %v2229 = vsub.s32 %v2226, %v2228
  %v2230 = vrot.slane %v2212, %v2229
  %v2231 = vcombine.low %v2223, %v2230
  %v2233 = vunpack.c.l.s4 1966171168
  %v2234 = vunpack.c.0.s8 %v2233
  %v2235 = vlaneseq
  %v2236 = vshrl.u32 %v2235, 7
  %v2237 = vsub.s32 %v2234, %v2236
  %v2238 = vrot.slane %v2231, %v2237
  %v2240 = vsub.f32 %v2193, %v2238
  %v2241 = vmul.f32 %v1817, %v2198
  %v2242 = vmul.f32 %v1819, %v2202
  %v2243 = vmul.f32 %v2066, %v2206
  %v2244 = vmul.f32 %v1821, %v2198
  %v2245 = vmul.f32 %v1823, %v2202
  %v2246 = vmul.f32 %v2069, %v2206
  %v2247 = vmul.f32 %v1827, %v2198
  %v2248 = vmul.f32 %v1829, %v2202
  %v2249 = vmul.f32 %v2074, %v2206
  %v2250 = vmul.f32 %v1831, %v2198
  %v2251 = vmul.f32 %v1833, %v2202
  %v2252 = vmul.f32 %v2077, %v2206
  %v2254 = vlaneseq
  %v2255 = vshrl.u32 %v2254, 7
  %v2256 = vsub.s32 0, %v2255
  %v2257 = vrot.slane %v2240, %v2256
  %v2258 = vlaneseq
  %v2259 = vshrl.u32 %v2258, 7
  %v2260 = vsub.s32 1, %v2259
  %v2261 = vrot.slane %v2240, %v2260
  %v2262 = vlaneseq
  %v2263 = vshrl.u32 %v2262, 7
  %v2264 = vsub.s32 2, %v2263
  %v2265 = vrot.slane %v2240, %v2264
  %v2269 = vadd.f32 %v2241, %v2257
  %v2270 = vadd.f32 %v2242, %v2261
  %v2271 = vadd.f32 %v2243, %v2265
  %v2272 = vadd.f32 %v2244, %v2257
  %v2273 = vadd.f32 %v2245, %v2261
  %v2274 = vadd.f32 %v2246, %v2265
  %v2275 = vadd.f32 %v2247, %v2257
  %v2276 = vadd.f32 %v2248, %v2261
  %v2277 = vadd.f32 %v2249, %v2265
  %v2278 = vadd.f32 %v2250, %v2257
  %v2279 = vadd.f32 %v2251, %v2261
  %v2280 = vadd.f32 %v2252, %v2265
  %v2281 = vmax.f32 %v2269, 0.0
  %v2282 = vmax.f32 %v2270, 0.0
  %v2283 = vmax.f32 %v2271, 0.0
  %v2284 = vmax.f32 %v2272, 0.0
  %v2285 = vmax.f32 %v2273, 0.0
  %v2286 = vmax.f32 %v2274, 0.0
  %v2287 = vmax.f32 %v2275, 0.0
  %v2288 = vmax.f32 %v2276, 0.0
  %v2289 = vmax.f32 %v2277, 0.0
  %v2290 = vmax.f32 %v2278, 0.0
  %v2291 = vmax.f32 %v2279, 0.0
  %v2292 = vmax.f32 %v2280, 0.0
  %2293 = vst [vmem:[%s4] sm:$0xff] %v2281
  %2294 = vst [vmem:[%s4 + $0x8] sm:$0xff] %v2282
  %2295 = vst [vmem:[%s4 + $0x10] sm:$0xff] %v2283
  %2296 = vst [vmem:[%s4 + $0x18] sm:$0xff] %v2284
  %2297 = vst [vmem:[%s4 + $0x20] sm:$0xff] %v2285
  %2298 = vst [vmem:[%s4 + $0x28] sm:$0xff] %v2286
  %2299 = vst [vmem:[%s4 + $0x30] sm:$0xff] %v2287
  %2300 = vst [vmem:[%s4 + $0x38] sm:$0xff] %v2288
  %2301 = vst [vmem:[%s4 + $0x40] sm:$0xff] %v2289
  %2302 = vst [vmem:[%s4 + $0x48] sm:$0xff] %v2290
  %2303 = vst [vmem:[%s4 + $0x50] sm:$0xff] %v2291
  %2304 = vst [vmem:[%s4 + $0x58] sm:$0xff] %v2292
  // Predicated region
  $region18: #{conv_bn_relu.1} parent=0 // pred_check
    _
  $region19: #{conv_bn_relu.1} parent=0 // pred_check_branch
    %2306 = sbr.rel (0) target = $region21
  $region20: #{conv_bn_relu.1} parent=0 // pred_region
    _
  $region21: #{conv_bn_relu.1} parent=0 // pred_fallthru
    _
  // Predicated region
  $region22: #{conv_bn_relu.1} parent=0 // pred_check
    _
  $region23: #{conv_bn_relu.1} parent=0 // pred_check_branch
    %2308 = sbr.rel (0) target = $region25
  $region24: #{conv_bn_relu.1} parent=0 // pred_region
    _
  $region25: #{conv_bn_relu.1} parent=0 // pred_fallthru
    _

</llo_original>
